<compile_context>
chip_gen: v7x
topology: tpu7x:2x2x1
jax: 0.10.0
libtpu: 0.0.40
codegen_flags: <defaults>
</compile_context>

<pallas_src>
import functools

import numpy as np

import jax
import jax.numpy as jnp
from jax.experimental import pallas as pl
from jax.experimental.pallas import tpu as pltpu

EPS = 1e-5
LANE = 128          # TPU lane width: keep lane tiles 128-dense for unmasked stores
MAX_TILE = 16384    # lanes per grid step; 8ch * 16384 * 4B = 512 KiB per ref per buffer,
                    # a few MiB total double-buffered -> fits v7x's 32 MiB scoped default
MIN_TILES = 2       # keep >= 2 "parallel" grid steps so v7x's two TensorCores both work


# ----------------------------------------------------------------------------
# Pallas kernels (each stage = one stacked MXU dot on a lane-dense (C, TM) tile)
# ----------------------------------------------------------------------------
def ffc_in_kernel(xl_ref, xg_ref, w_ref, sh_ref, oxl_ref, os_ref):
    """Fused input stage.

    [out_xl ; s_pre] = [[bnl*Wll, bnl*Wgl], [0, bn1*W1]] @ [x_l ; x_g] + [sh_l ; sh_1]
    out_xl = bn_l(convl2l(x_l) + convg2l(x_g))      (act = Identity)
    s      = relu(bn1(st_conv1(x_g)))
    """
    x = jnp.concatenate([xl_ref[...].astype(jnp.float32),
                         xg_ref[...].astype(jnp.float32)], axis=0)
    y = jnp.dot(w_ref[...], x, preferred_element_type=jnp.float32) + sh_ref[...]
    ncl = oxl_ref.shape[0]
    oxl_ref[...] = y[:ncl].astype(oxl_ref.dtype)
    os_ref[...] = jnp.maximum(y[ncl:], 0.0).astype(os_ref.dtype)


def fu_conv_kernel(xr_ref, xi_ref, w_ref, sh_ref, or_ref, oi_ref):
    """FourierUnit spectral 1x1 conv + folded BN + ReLU; real/imag in/out as separate refs."""
    x = jnp.concatenate([xr_ref[...].astype(jnp.float32),
                         xi_ref[...].astype(jnp.float32)], axis=0)
    y = jnp.maximum(
        jnp.dot(w_ref[...], x, preferred_element_type=jnp.float32) + sh_ref[...], 0.0)
    c = or_ref.shape[0]
    or_ref[...] = y[:c].astype(or_ref.dtype)
    oi_ref[...] = y[c:].astype(oi_ref.dtype)


def ffc_out_kernel(s_ref, fu_ref, xl_ref, w_ref, sh_ref, o_ref):
    """Fused output stage.

    out_xg = [bng*W2 | bng*Wlg] @ [s + fu ; x_l] + sh_g
           = bn_g(st_conv2(s + fu) + convl2g(x_l))
    """
    z = jnp.concatenate(
        [s_ref[...].astype(jnp.float32) + fu_ref[...].astype(jnp.float32),
         xl_ref[...].astype(jnp.float32)], axis=0)
    o_ref[...] = (jnp.dot(w_ref[...], z, preferred_element_type=jnp.float32)
                  + sh_ref[...]).astype(o_ref.dtype)


# ----------------------------------------------------------------------------
# pallas_call wrapper
# ----------------------------------------------------------------------------
def _lane_tiling(lanes):
    """Pick (tile, n_tiles) for the lane axis.

    tile is a multiple of 128 (lane-dense stores) whenever lanes >= 128, capped near
    MAX_TILE, with >= MIN_TILES grid steps when the extent allows (v7x has two
    TensorCores; a size-1 grid leaves one idle).  When the tile does not divide `lanes`
    a cdiv grid is used and Pallas masks the last partial block (no wrapper jnp.pad).
    """
    if lanes <= LANE:
        return lanes, 1
    target = max(MIN_TILES, pl.cdiv(lanes, MAX_TILE))
    tile = max(LANE, (lanes // (LANE * target)) * LANE)
    return tile, pl.cdiv(lanes, tile)


def _run(kernel, lane_inputs, consts, out_channels, out_dtypes, lanes):
    """Run `kernel` on a 1-D lane-tile grid.

    lane_inputs: (C_i, lanes) arrays streamed along the lane (last) axis.
    consts:      small 2-D arrays (stacked weight / stacked shift), one full block each.
    outputs:     (out_channels[k], lanes) arrays of dtype out_dtypes[k].
    """
    tile, n_tiles = _lane_tiling(lanes)
    in_specs = ([pl.BlockSpec((a.shape[0], tile), lambda i: (0, i)) for a in lane_inputs]
                + [pl.BlockSpec(a.shape, lambda i: (0, 0)) for a in consts])
    out_specs = tuple(pl.BlockSpec((c, tile), lambda i: (0, i)) for c in out_channels)
    out_shape = tuple(jax.ShapeDtypeStruct((c, lanes), d)
                      for c, d in zip(out_channels, out_dtypes))
    return pl.pallas_call(
        kernel,
        out_shape=out_shape,
        grid=(n_tiles,),
        in_specs=in_specs,
        out_specs=out_specs,
        compiler_params=pltpu.CompilerParams(dimension_semantics=("parallel",)),
    )(*lane_inputs, *consts)


def bn_fold(p, prefix):
    g = p[prefix + "_gamma"]
    b = p[prefix + "_beta"]
    m = p[prefix + "_mean"]
    v = p[prefix + "_var"]
    s = g / jnp.sqrt(v + EPS)
    return s, b - m * s


def _act_dtype():
    """Activation streaming dtype: bf16 on v6e/v7x (native VPU/MXU bf16), f32 elsewhere."""
    try:
        kind = jax.devices()[0].device_kind.lower()
    except Exception:
        return jnp.float32
    return jnp.bfloat16 if ("v6" in kind or "v7" in kind) else jnp.float32


# ----------------------------------------------------------------------------
# FFC_BN_ACT forward (Pallas)
# ----------------------------------------------------------------------------
def ffc_bn_act_forward(x_l, x_g, p, *, act_dtype=jnp.float32):
    n, in_cl, h, w = x_l.shape
    in_cg = x_g.shape[1]
    m = h * w
    lanes = n * m
    out_cl = p["l2l_w"].shape[0]
    out_cg = p["l2g_w"].shape[0]
    c_half = p["st_conv1_w"].shape[0]

    # ---- fold BN (inference) into per-channel scale/shift; scale goes into the weights
    sc_l, sh_l = bn_fold(p, "bn_l")
    sc_g, sh_g = bn_fold(p, "bn_g")
    sc_1, sh_1 = bn_fold(p, "st_bn1")
    sc_f, sh_f = bn_fold(p, "fu_bn")

    # stacked input-stage weight: rows [out_xl (out_cl) ; s (c_half)], cols [x_l | x_g]
    w_in = jnp.concatenate([
        jnp.concatenate([p["l2l_w"] * sc_l[:, None],
                         p["g2l_w"] * sc_l[:, None]], axis=1),
        jnp.concatenate([jnp.zeros((c_half, in_cl), jnp.float32),
                         p["st_conv1_w"] * sc_1[:, None]], axis=1),
    ], axis=0)                                                   # (out_cl+c_half, in_cl+in_cg)
    sh_in = jnp.concatenate([sh_l, sh_1])[:, None]               # (out_cl+c_half, 1)

    # channel-major, batch folded into lanes: (N, C, H, W) -> (C, N*H*W)
    xl_t = jnp.transpose(x_l, (1, 0, 2, 3)).reshape(in_cl, lanes).astype(act_dtype)
    xg_t = jnp.transpose(x_g, (1, 0, 2, 3)).reshape(in_cg, lanes).astype(act_dtype)

    # ---- kernel 1: local branch + SpectralTransform.conv1 (one stacked dot; l2g deferred)
    out_xl_t, s_t = _run(
        ffc_in_kernel,
        lane_inputs=[xl_t, xg_t],
        consts=[w_in, sh_in],
        out_channels=[out_cl, c_half],
        out_dtypes=[jnp.float32, act_dtype],
        lanes=lanes)

    # ---- FourierUnit: rfft2 (ortho) -> spectral 1x1 conv + BN + ReLU -> irfft2 (ortho)
    # TODO(synk): rfftn/irfftn have no Pallas primitive; they stay in jnp (channel-major
    # layout keeps them transpose-free around the kernels).
    s_img = s_t.astype(jnp.float32).reshape(c_half, n, h, w)
    f = jnp.fft.rfftn(s_img, axes=(-2, -1), norm="ortho")        # (c_half, N, H, Wf) complex
    wf_ = f.shape[-1]
    lf = n * h * wf_
    lf_pad = LANE * pl.cdiv(lf, LANE)   # 128-align the spectral lane extent -> dense stores
    fr = f.real.reshape(c_half, lf).astype(act_dtype)
    fi = f.imag.reshape(c_half, lf).astype(act_dtype)
    if lf_pad != lf:
        pad = ((0, 0), (0, lf_pad - lf))
        fr, fi = jnp.pad(fr, pad), jnp.pad(fi, pad)

    # Kernel channel layout is [real_0..real_{c-1}, imag_0..imag_{c-1}]; PyTorch interleaves
    # [r0,i0,r1,i1,...] -- handled by permuting the (constant) weight/shift at trace time.
    perm = np.concatenate([np.arange(0, 2 * c_half, 2), np.arange(1, 2 * c_half, 2)])
    w_fu = (p["fu_conv_w"] * sc_f[:, None])[perm][:, perm]       # rows & cols permuted
    sh_fu = sh_f[perm][:, None]

    yr, yi = _run(
        fu_conv_kernel,
        lane_inputs=[fr, fi],
        consts=[w_fu, sh_fu],
        out_channels=[c_half, c_half],
        out_dtypes=[act_dtype, act_dtype],
        lanes=lf_pad)

    fc = jax.lax.complex(
        yr[:, :lf].astype(jnp.float32).reshape(c_half, n, h, wf_),
        yi[:, :lf].astype(jnp.float32).reshape(c_half, n, h, wf_))
    fu_img = jnp.fft.irfftn(fc, s=(h, w), axes=(-2, -1), norm="ortho")   # (c_half, N, H, W)
    fu_t = fu_img.reshape(c_half, lanes).astype(act_dtype)

    # ---- kernel 3: out_xg = bn_g( st_conv2(s + fu) + convl2g(x_l) )  (one stacked dot)
    w_out = jnp.concatenate([p["st_conv2_w"] * sc_g[:, None],
                             p["l2g_w"] * sc_g[:, None]], axis=1)  # (out_cg, c_half+in_cl)
    (out_xg_t,) = _run(
        ffc_out_kernel,
        lane_inputs=[s_t, fu_t, xl_t],
        consts=[w_out, sh_g[:, None]],
        out_channels=[out_cg],
        out_dtypes=[jnp.float32],
        lanes=lanes)

    out_xl = jnp.transpose(out_xl_t.reshape(out_cl, n, h, w), (1, 0, 2, 3))
    out_xg = jnp.transpose(out_xg_t.reshape(out_cg, n, h, w), (1, 0, 2, 3))
    return out_xl, out_xg


# ----------------------------------------------------------------------------
# Pure-JAX reference (mirrors the PyTorch forward, BN in inference mode)
# ----------------------------------------------------------------------------
def reference_forward(x_l, x_g, p):
    def conv(x, wt):  # 1x1 conv, weight (Cout, Cin)
        return jnp.einsum("nchw,oc->nohw", x, wt)

    def bn(x, prefix):
        g, b = p[prefix + "_gamma"], p[prefix + "_beta"]
        m, v = p[prefix + "_mean"], p[prefix + "_var"]
        s = g / jnp.sqrt(v + EPS)
        return x * s[None, :, None, None] + (b - m * s)[None, :, None, None]

    out_xl = bn(conv(x_l, p["l2l_w"]) + conv(x_g, p["g2l_w"]), "bn_l")

    s = jax.nn.relu(bn(conv(x_g, p["st_conv1_w"]), "st_bn1"))
    n, c, h, w = s.shape
    f = jnp.fft.rfftn(s, axes=(-2, -1), norm="ortho")
    wf = f.shape[-1]
    ff = jnp.stack([f.real, f.imag], -1)
    ff = jnp.transpose(ff, (0, 1, 4, 2, 3)).reshape(n, 2 * c, h, wf)
    ff = jax.nn.relu(bn(conv(ff, p["fu_conv_w"]), "fu_bn"))
    ff = ff.reshape(n, c, 2, h, wf)
    fc = ff[:, :, 0] + 1j * ff[:, :, 1]
    fu_out = jnp.fft.irfftn(fc, s=(h, w), axes=(-2, -1), norm="ortho")
    spec = conv(s + fu_out, p["st_conv2_w"])

    out_xg = bn(conv(x_l, p["l2g_w"]) + spec, "bn_g")
    return out_xl, out_xg


# ----------------------------------------------------------------------------
# Deterministic parameter init (shapes dictated by the module __init__)
# ----------------------------------------------------------------------------
def init_params(key, in_cl, in_cg, out_cl, out_cg):
    keys = iter(jax.random.split(key, 40))

    def w(shape):
        return 0.2 * jax.random.normal(next(keys), shape, jnp.float32)

    def bn(c, prefix, d):
        d[prefix + "_gamma"] = jax.random.uniform(next(keys), (c,), jnp.float32, 0.5, 1.5)
        d[prefix + "_beta"] = 0.1 * jax.random.normal(next(keys), (c,), jnp.float32)
        d[prefix + "_mean"] = 0.1 * jax.random.normal(next(keys), (c,), jnp.float32)
        d[prefix + "_var"] = jax.random.uniform(next(keys), (c,), jnp.float32, 0.5, 1.5)

    p = {}
    p["l2l_w"] = w((out_cl, in_cl))              # Conv2d(in_cl, out_cl, 1)
    p["l2g_w"] = w((out_cg, in_cl))              # Conv2d(in_cl, out_cg, 1)
    p["g2l_w"] = w((out_cl, in_cg))              # Conv2d(in_cg, out_cl, 1)
    # SpectralTransform(in_cg, out_cg)
    c_half = out_cg // 2
    p["st_conv1_w"] = w((c_half, in_cg))         # Conv2d(in_cg, out_cg//2, 1)
    bn(c_half, "st_bn1", p)
    p["fu_conv_w"] = w((2 * c_half, 2 * c_half))  # FourierUnit conv: Conv2d(2*Ch, 2*Ch, 1)
    bn(2 * c_half, "fu_bn", p)
    p["st_conv2_w"] = w((out_cg, c_half))        # Conv2d(out_cg//2, out_cg, 1)
    bn(out_cl, "bn_l", p)
    bn(out_cg, "bn_g", p)
    return p


if __name__ == "__main__":
    # FFC_BN_ACT(in_channels=8, out_channels=8, kernel_size=1, ratio_gin=0.5, ratio_gout=0.5)
    in_channels, out_channels = 8, 8
    ratio_gin = ratio_gout = 0.5
    in_cg = int(in_channels * ratio_gin)
    in_cl = in_channels - in_cg
    out_cg = int(out_channels * ratio_gout)
    out_cl = out_channels - out_cg

    key = jax.random.PRNGKey(0)
    k_xl, k_xg, k_p = jax.random.split(key, 3)
    batch, hh, ww = 2, 16, 16
    x_l = jax.random.normal(k_xl, (batch, in_cl, hh, ww), jnp.float32)
    x_g = jax.random.normal(k_xg, (batch, in_cg, hh, ww), jnp.float32)
    params = init_params(k_p, in_cl, in_cg, out_cl, out_cg)

    act_dtype = _act_dtype()
    fwd = jax.jit(functools.partial(ffc_bn_act_forward, act_dtype=act_dtype))
    out_l, out_g = fwd(x_l, x_g, params)
    out_l = jax.block_until_ready(out_l)
    out_g = jax.block_until_ready(out_g)

    ref_l, ref_g = reference_forward(x_l, x_g, params)
    assert out_l.shape == (batch, out_cl, hh, ww)
    assert out_g.shape == (batch, out_cg, hh, ww)
    # bf16 activation streaming (v6e/v7x) quantizes intermediates -> looser tolerance.
    tol = 1e-4 if act_dtype == jnp.float32 else 5e-2
    assert jnp.allclose(out_l, ref_l, rtol=tol, atol=tol), "local branch mismatch"
    assert jnp.allclose(out_g, ref_g, rtol=tol, atol=tol), "global branch mismatch"

    print("KERNEL_OK")
</pallas_src>

<mosaic_0001>
module attributes {stable_mosaic.version = 11 : i64} {
  func.func @ffc_in_kernel(%arg0: i32, %arg1: memref<4x256xf32, #tpu.memory_space<vmem>>, %arg2: memref<4x256xf32, #tpu.memory_space<vmem>>, %arg3: memref<6x8xf32, #tpu.memory_space<vmem>>, %arg4: memref<6x1xf32, #tpu.memory_space<vmem>>, %arg5: memref<4x256xf32, #tpu.memory_space<vmem>>, %arg6: memref<2x256xf32, #tpu.memory_space<vmem>>) attributes {dimension_semantics = [#tpu.dimension_semantics<parallel>], iteration_bounds = array<i64: 2>, scalar_prefetch = 0 : i64, scratch_operands = 0 : i64, tpu.core_type = #tpu.core_type<tc>, window_params = [{transform_indices = @transform_0, window_bounds = array<i64: 4, 256>}, {transform_indices = @transform_1, window_bounds = array<i64: 4, 256>}, {pipeline_mode = #tpu.pipeline_mode<synchronous>, transform_indices = @transform_2, window_bounds = array<i64: 6, 8>}, {pipeline_mode = #tpu.pipeline_mode<synchronous>, transform_indices = @transform_3, window_bounds = array<i64: 6, 1>}, {transform_indices = @transform_4, window_bounds = array<i64: 4, 256>}, {transform_indices = @transform_5, window_bounds = array<i64: 2, 256>}]} {
    %c0 = arith.constant 0 : index
    %c0_0 = arith.constant 0 : index
    %0 = vector.load %arg1[%c0, %c0_0] : memref<4x256xf32, #tpu.memory_space<vmem>>, vector<4x256xf32>
    %c0_1 = arith.constant 0 : index
    %c0_2 = arith.constant 0 : index
    %1 = vector.load %arg2[%c0_1, %c0_2] : memref<4x256xf32, #tpu.memory_space<vmem>>, vector<4x256xf32>
    %2 = tpu.concatenate %0, %1 in 0 : vector<4x256xf32>, vector<4x256xf32> -> vector<8x256xf32>
    %c0_3 = arith.constant 0 : index
    %c0_4 = arith.constant 0 : index
    %3 = vector.load %arg3[%c0_3, %c0_4] : memref<6x8xf32, #tpu.memory_space<vmem>>, vector<6x8xf32>
    %cst = arith.constant dense<0.000000e+00> : vector<6x256xf32>
    %4 = tpu.matmul %3, %2, %cst {dimension_numbers = #tpu.dot_dimension_numbers<[1], [0], [0], [1], [0, 0, 1, 1], [], []>} : vector<6x8xf32>, vector<8x256xf32>, vector<6x256xf32> -> vector<6x256xf32>
    %c0_5 = arith.constant 0 : index
    %c0_6 = arith.constant 0 : index
    %5 = vector.load %arg4[%c0_5, %c0_6] : memref<6x1xf32, #tpu.memory_space<vmem>>, vector<6x1xf32>
    %6 = vector.broadcast %5 : vector<6x1xf32> to vector<6x256xf32>
    %7 = arith.addf %4, %6 : vector<6x256xf32>
    %8 = vector.extract_strided_slice %7 {offsets = [0, 0], sizes = [4, 256], strides = [1, 1]} : vector<6x256xf32> to vector<4x256xf32>
    %c0_7 = arith.constant 0 : index
    %c0_8 = arith.constant 0 : index
    %9 = vector.load %arg5[%c0_7, %c0_8] : memref<4x256xf32, #tpu.memory_space<vmem>>, vector<4x256xf32>
    tpu.vector_store %arg5[%c0_7, %c0_8], %8 {strides = array<i32>} : memref<4x256xf32, #tpu.memory_space<vmem>>, vector<4x256xf32>,
    %10 = vector.extract_strided_slice %7 {offsets = [4, 0], sizes = [2, 256], strides = [1, 1]} : vector<6x256xf32> to vector<2x256xf32>
    %cst_9 = arith.constant 0.000000e+00 : f32
    %11 = vector.broadcast %cst_9 : f32 to vector<2x256xf32>
    %12 = arith.maximumf %10, %11 : vector<2x256xf32>
    %c0_10 = arith.constant 0 : index
    %c0_11 = arith.constant 0 : index
    %13 = vector.load %arg6[%c0_10, %c0_11] : memref<2x256xf32, #tpu.memory_space<vmem>>, vector<2x256xf32>
    tpu.vector_store %arg6[%c0_10, %c0_11], %12 {strides = array<i32>} : memref<2x256xf32, #tpu.memory_space<vmem>>, vector<2x256xf32>,
    return
  }
  func.func @transform_0(%arg0: i32) -> (i32, i32) {
    %c0_i32 = arith.constant 0 : i32
    %c0_i32_0 = arith.constant 0 : i32
    return %c0_i32, %arg0 : i32, i32
  }
  func.func @transform_1(%arg0: i32) -> (i32, i32) {
    %c0_i32 = arith.constant 0 : i32
    %c0_i32_0 = arith.constant 0 : i32
    return %c0_i32, %arg0 : i32, i32
  }
  func.func @transform_2(%arg0: i32) -> (i32, i32) {
    %c0_i32 = arith.constant 0 : i32
    %c0_i32_0 = arith.constant 0 : i32
    %c0_i32_1 = arith.constant 0 : i32
    return %c0_i32, %c0_i32_0 : i32, i32
  }
  func.func @transform_3(%arg0: i32) -> (i32, i32) {
    %c0_i32 = arith.constant 0 : i32
    %c0_i32_0 = arith.constant 0 : i32
    %c0_i32_1 = arith.constant 0 : i32
    return %c0_i32, %c0_i32_0 : i32, i32
  }
  func.func @transform_4(%arg0: i32) -> (i32, i32) {
    %c0_i32 = arith.constant 0 : i32
    %c0_i32_0 = arith.constant 0 : i32
    return %c0_i32, %arg0 : i32, i32
  }
  func.func @transform_5(%arg0: i32) -> (i32, i32) {
    %c0_i32 = arith.constant 0 : i32
    %c0_i32_0 = arith.constant 0 : i32
    return %c0_i32, %arg0 : i32, i32
  }
}

module attributes {stable_mosaic.version = 11 : i64} {
  func.func @fu_conv_kernel(%arg0: i32, %arg1: memref<2x128xf32, #tpu.memory_space<vmem>>, %arg2: memref<2x128xf32, #tpu.memory_space<vmem>>, %arg3: memref<4x4xf32, #tpu.memory_space<vmem>>, %arg4: memref<4x1xf32, #tpu.memory_space<vmem>>, %arg5: memref<2x128xf32, #tpu.memory_space<vmem>>, %arg6: memref<2x128xf32, #tpu.memory_space<vmem>>) attributes {dimension_semantics = [#tpu.dimension_semantics<parallel>], iteration_bounds = array<i64: 3>, scalar_prefetch = 0 : i64, scratch_operands = 0 : i64, tpu.core_type = #tpu.core_type<tc>, window_params = [{transform_indices = @transform_0, window_bounds = array<i64: 2, 128>}, {transform_indices = @transform_1, window_bounds = array<i64: 2, 128>}, {pipeline_mode = #tpu.pipeline_mode<synchronous>, transform_indices = @transform_2, window_bounds = array<i64: 4, 4>}, {pipeline_mode = #tpu.pipeline_mode<synchronous>, transform_indices = @transform_3, window_bounds = array<i64: 4, 1>}, {transform_indices = @transform_4, window_bounds = array<i64: 2, 128>}, {transform_indices = @transform_5, window_bounds = array<i64: 2, 128>}]} {
    %c0 = arith.constant 0 : index
    %c0_0 = arith.constant 0 : index
    %0 = vector.load %arg1[%c0, %c0_0] : memref<2x128xf32, #tpu.memory_space<vmem>>, vector<2x128xf32>
    %c0_1 = arith.constant 0 : index
    %c0_2 = arith.constant 0 : index
    %1 = vector.load %arg2[%c0_1, %c0_2] : memref<2x128xf32, #tpu.memory_space<vmem>>, vector<2x128xf32>
    %2 = tpu.concatenate %0, %1 in 0 : vector<2x128xf32>, vector<2x128xf32> -> vector<4x128xf32>
    %c0_3 = arith.constant 0 : index
    %c0_4 = arith.constant 0 : index
    %3 = vector.load %arg3[%c0_3, %c0_4] : memref<4x4xf32, #tpu.memory_space<vmem>>, vector<4x4xf32>
    %cst = arith.constant dense<0.000000e+00> : vector<4x128xf32>
    %4 = tpu.matmul %3, %2, %cst {dimension_numbers = #tpu.dot_dimension_numbers<[1], [0], [0], [1], [0, 0, 1, 1], [], []>} : vector<4x4xf32>, vector<4x128xf32>, vector<4x128xf32> -> vector<4x128xf32>
    %c0_5 = arith.constant 0 : index
    %c0_6 = arith.constant 0 : index
    %5 = vector.load %arg4[%c0_5, %c0_6] : memref<4x1xf32, #tpu.memory_space<vmem>>, vector<4x1xf32>
    %6 = vector.broadcast %5 : vector<4x1xf32> to vector<4x128xf32>
    %7 = arith.addf %4, %6 : vector<4x128xf32>
    %cst_7 = arith.constant 0.000000e+00 : f32
    %8 = vector.broadcast %cst_7 : f32 to vector<4x128xf32>
    %9 = arith.maximumf %7, %8 : vector<4x128xf32>
    %10 = vector.extract_strided_slice %9 {offsets = [0, 0], sizes = [2, 128], strides = [1, 1]} : vector<4x128xf32> to vector<2x128xf32>
    %c0_8 = arith.constant 0 : index
    %c0_9 = arith.constant 0 : index
    %11 = vector.load %arg5[%c0_8, %c0_9] : memref<2x128xf32, #tpu.memory_space<vmem>>, vector<2x128xf32>
    tpu.vector_store %arg5[%c0_8, %c0_9], %10 {strides = array<i32>} : memref<2x128xf32, #tpu.memory_space<vmem>>, vector<2x128xf32>,
    %12 = vector.extract_strided_slice %9 {offsets = [2, 0], sizes = [2, 128], strides = [1, 1]} : vector<4x128xf32> to vector<2x128xf32>
    %c0_10 = arith.constant 0 : index
    %c0_11 = arith.constant 0 : index
    %13 = vector.load %arg6[%c0_10, %c0_11] : memref<2x128xf32, #tpu.memory_space<vmem>>, vector<2x128xf32>
    tpu.vector_store %arg6[%c0_10, %c0_11], %12 {strides = array<i32>} : memref<2x128xf32, #tpu.memory_space<vmem>>, vector<2x128xf32>,
    return
  }
  func.func @transform_0(%arg0: i32) -> (i32, i32) {
    %c0_i32 = arith.constant 0 : i32
    %c0_i32_0 = arith.constant 0 : i32
    return %c0_i32, %arg0 : i32, i32
  }
  func.func @transform_1(%arg0: i32) -> (i32, i32) {
    %c0_i32 = arith.constant 0 : i32
    %c0_i32_0 = arith.constant 0 : i32
    return %c0_i32, %arg0 : i32, i32
  }
  func.func @transform_2(%arg0: i32) -> (i32, i32) {
    %c0_i32 = arith.constant 0 : i32
    %c0_i32_0 = arith.constant 0 : i32
    %c0_i32_1 = arith.constant 0 : i32
    return %c0_i32, %c0_i32_0 : i32, i32
  }
  func.func @transform_3(%arg0: i32) -> (i32, i32) {
    %c0_i32 = arith.constant 0 : i32
    %c0_i32_0 = arith.constant 0 : i32
    %c0_i32_1 = arith.constant 0 : i32
    return %c0_i32, %c0_i32_0 : i32, i32
  }
  func.func @transform_4(%arg0: i32) -> (i32, i32) {
    %c0_i32 = arith.constant 0 : i32
    %c0_i32_0 = arith.constant 0 : i32
    return %c0_i32, %arg0 : i32, i32
  }
  func.func @transform_5(%arg0: i32) -> (i32, i32) {
    %c0_i32 = arith.constant 0 : i32
    %c0_i32_0 = arith.constant 0 : i32
    return %c0_i32, %arg0 : i32, i32
  }
}

module attributes {stable_mosaic.version = 11 : i64} {
  func.func @ffc_out_kernel(%arg0: i32, %arg1: memref<2x256xf32, #tpu.memory_space<vmem>>, %arg2: memref<2x256xf32, #tpu.memory_space<vmem>>, %arg3: memref<4x256xf32, #tpu.memory_space<vmem>>, %arg4: memref<4x6xf32, #tpu.memory_space<vmem>>, %arg5: memref<4x1xf32, #tpu.memory_space<vmem>>, %arg6: memref<4x256xf32, #tpu.memory_space<vmem>>) attributes {dimension_semantics = [#tpu.dimension_semantics<parallel>], iteration_bounds = array<i64: 2>, scalar_prefetch = 0 : i64, scratch_operands = 0 : i64, tpu.core_type = #tpu.core_type<tc>, window_params = [{transform_indices = @transform_0, window_bounds = array<i64: 2, 256>}, {transform_indices = @transform_1, window_bounds = array<i64: 2, 256>}, {transform_indices = @transform_2, window_bounds = array<i64: 4, 256>}, {pipeline_mode = #tpu.pipeline_mode<synchronous>, transform_indices = @transform_3, window_bounds = array<i64: 4, 6>}, {pipeline_mode = #tpu.pipeline_mode<synchronous>, transform_indices = @transform_4, window_bounds = array<i64: 4, 1>}, {transform_indices = @transform_5, window_bounds = array<i64: 4, 256>}]} {
    %c0 = arith.constant 0 : index
    %c0_0 = arith.constant 0 : index
    %0 = vector.load %arg1[%c0, %c0_0] : memref<2x256xf32, #tpu.memory_space<vmem>>, vector<2x256xf32>
    %c0_1 = arith.constant 0 : index
    %c0_2 = arith.constant 0 : index
    %1 = vector.load %arg2[%c0_1, %c0_2] : memref<2x256xf32, #tpu.memory_space<vmem>>, vector<2x256xf32>
    %2 = arith.addf %0, %1 : vector<2x256xf32>
    %c0_3 = arith.constant 0 : index
    %c0_4 = arith.constant 0 : index
    %3 = vector.load %arg3[%c0_3, %c0_4] : memref<4x256xf32, #tpu.memory_space<vmem>>, vector<4x256xf32>
    %4 = tpu.concatenate %2, %3 in 0 : vector<2x256xf32>, vector<4x256xf32> -> vector<6x256xf32>
    %c0_5 = arith.constant 0 : index
    %c0_6 = arith.constant 0 : index
    %5 = vector.load %arg4[%c0_5, %c0_6] : memref<4x6xf32, #tpu.memory_space<vmem>>, vector<4x6xf32>
    %cst = arith.constant dense<0.000000e+00> : vector<4x256xf32>
    %6 = tpu.matmul %5, %4, %cst {dimension_numbers = #tpu.dot_dimension_numbers<[1], [0], [0], [1], [0, 0, 1, 1], [], []>} : vector<4x6xf32>, vector<6x256xf32>, vector<4x256xf32> -> vector<4x256xf32>
    %c0_7 = arith.constant 0 : index
    %c0_8 = arith.constant 0 : index
    %7 = vector.load %arg5[%c0_7, %c0_8] : memref<4x1xf32, #tpu.memory_space<vmem>>, vector<4x1xf32>
    %8 = vector.broadcast %7 : vector<4x1xf32> to vector<4x256xf32>
    %9 = arith.addf %6, %8 : vector<4x256xf32>
    %c0_9 = arith.constant 0 : index
    %c0_10 = arith.constant 0 : index
    %10 = vector.load %arg6[%c0_9, %c0_10] : memref<4x256xf32, #tpu.memory_space<vmem>>, vector<4x256xf32>
    tpu.vector_store %arg6[%c0_9, %c0_10], %9 {strides = array<i32>} : memref<4x256xf32, #tpu.memory_space<vmem>>, vector<4x256xf32>,
    return
  }
  func.func @transform_0(%arg0: i32) -> (i32, i32) {
    %c0_i32 = arith.constant 0 : i32
    %c0_i32_0 = arith.constant 0 : i32
    return %c0_i32, %arg0 : i32, i32
  }
  func.func @transform_1(%arg0: i32) -> (i32, i32) {
    %c0_i32 = arith.constant 0 : i32
    %c0_i32_0 = arith.constant 0 : i32
    return %c0_i32, %arg0 : i32, i32
  }
  func.func @transform_2(%arg0: i32) -> (i32, i32) {
    %c0_i32 = arith.constant 0 : i32
    %c0_i32_0 = arith.constant 0 : i32
    return %c0_i32, %arg0 : i32, i32
  }
  func.func @transform_3(%arg0: i32) -> (i32, i32) {
    %c0_i32 = arith.constant 0 : i32
    %c0_i32_0 = arith.constant 0 : i32
    %c0_i32_1 = arith.constant 0 : i32
    return %c0_i32, %c0_i32_0 : i32, i32
  }
  func.func @transform_4(%arg0: i32) -> (i32, i32) {
    %c0_i32 = arith.constant 0 : i32
    %c0_i32_0 = arith.constant 0 : i32
    %c0_i32_1 = arith.constant 0 : i32
    return %c0_i32, %c0_i32_0 : i32, i32
  }
  func.func @transform_5(%arg0: i32) -> (i32, i32) {
    %c0_i32 = arith.constant 0 : i32
    %c0_i32_0 = arith.constant 0 : i32
    return %c0_i32, %arg0 : i32, i32
  }
}

</mosaic_0001>

<llo_original>
// kernel: ffc_bn_act_forward.3
$region0: #{ffc_bn_act_forward.3}
  #allocation0 [shape = 'u32[]', space=smem, size = 0x4, offset = 0x4, fixed_abs, tag = 'smem constant byte address 0x4 - core index']
  #allocation1 [shape = 'u32[144,128]{1,0:T(1,128)}', space=vmem, size = 0x12000, scoped, tag = 'internal scratch']
  %s0 = inlined_call_operand.vmem [shape: f32[4,512], index: 0, kind: input, shape index: {}]
  %s1 = inlined_call_operand.vmem [shape: f32[4,512], index: 1, kind: input, shape index: {}]
  %s2 = inlined_call_operand.vmem [shape: f32[6,8], index: 2, kind: input, shape index: {}]
  %s3 = inlined_call_operand.vmem [shape: f32[6,1], index: 3, kind: input, shape index: {}]
  %s4 = inlined_call_operand.vmem [shape: f32[4,512], index: 4, kind: output, shape index: {0}]
  %s5 = inlined_call_operand.vmem [shape: f32[2,512], index: 5, kind: output, shape index: {1}]
  %6 = xla_tuple %s4, %s5
  %s7 = sld [smem:[#allocation0]]
  $region57: #{ffc_bn_act_forward.3} parent=0
    _
  %s9 = ssub.s32 1, %s7
  %s10 = scalar_select 0, %s9, %s7
  loop: start=0, step=1, limit=4
  $region2: #{ffc_bn_act_forward.3} parent=0 // loop_pre_header
    _
  $region3: #{ffc_bn_act_forward.3} parent=0 // loop_header
    %s12 = sphi 0, %s16
    %p13 = scmp.ge.s32.totalorder %s12, 4
    %s22 = sphi 0, %s24
    %s25 = sphi 0, %s22
    %s26 = sphi 0, %s25
    %s42 = sphi 0, %s26
    %s48 = sphi 0, %s50
    %s51 = sphi 0, %s48
    %s52 = sphi 0, %s51
    %s68 = sphi 0, %s52
    %s72 = sphi 0, %s72
    %s74 = sphi 0, %s72
    %s75 = sphi 0, %s74
    %s89 = sphi 0, %s75
    %s93 = sphi 0, %s93
    %s95 = sphi 0, %s93
    %s96 = sphi 0, %s95
    %s110 = sphi 0, %s96
    %s116 = sphi 0, %s118
    %s119 = sphi 0, %s116
    %s120 = sphi 0, %s119
    %s136 = sphi 0, %s120
    %s142 = sphi 0, %s144
    %s145 = sphi 0, %s142
    %s146 = sphi 0, %s145
    %s162 = sphi 0, %s146
  $region4: #{ffc_bn_act_forward.3} parent=0 // loop_header_branch
    %15 = sbr.rel (%p13) target = $region8
  $region5: #{ffc_bn_act_forward.3} parent=0 // loop_body
    %s17 = ssub.s32 %s12, 1
    %s18 = ssub.s32 %s12, 2
    %s19 = sadd.s32 %s12, 1
    %s20 = ssub.s32 %s12, %s19
    %p21 = scmp.eq.s32.totalorder %s20, 0
    %s23 = sadd.s32 %s22, 1
    %s24 = scalar_select %p21, %s22, %s23
    %p27 = pneg %p21
    %p28 = scmp.eq.s32.totalorder %s12, 1
    %p29 = por %p27, %p28
    %p30 = scmp.ne.s32.totalorder %s22, %s25
    %p31 = scmp.eq.s32.totalorder %s12, 0
    %p32 = por %p30, %p31
    %p33 = scmp.ne.s32.totalorder %s22, %s25
    %p34 = scmp.eq.s32.totalorder %s17, 1
    %p35 = por %p33, %p34
    %p36 = scmp.ne.s32.totalorder %s25, %s26
    %p37 = scmp.eq.s32.totalorder %s17, 0
    %p38 = por %p36, %p37
    %p39 = scmp.ne.s32.totalorder %s25, %s26
    %p40 = scmp.eq.s32.totalorder %s18, 1
    %p41 = por %p39, %p40
    %p43 = scmp.ne.s32.totalorder %s26, %s42
    %p44 = scmp.eq.s32.totalorder %s18, 0
    %p45 = por %p43, %p44
    %s46 = ssub.s32 %s12, %s19
    %p47 = scmp.eq.s32.totalorder %s46, 0
    %s49 = sadd.s32 %s48, 1
    %s50 = scalar_select %p47, %s48, %s49
    %p53 = pneg %p47
    %p54 = scmp.eq.s32.totalorder %s12, 1
    %p55 = por %p53, %p54
    %p56 = scmp.ne.s32.totalorder %s48, %s51
    %p57 = scmp.eq.s32.totalorder %s12, 0
    %p58 = por %p56, %p57
    %p59 = scmp.ne.s32.totalorder %s48, %s51
    %p60 = scmp.eq.s32.totalorder %s17, 1
    %p61 = por %p59, %p60
    %p62 = scmp.ne.s32.totalorder %s51, %s52
    %p63 = scmp.eq.s32.totalorder %s17, 0
    %p64 = por %p62, %p63
    %p65 = scmp.ne.s32.totalorder %s51, %s52
    %p66 = scmp.eq.s32.totalorder %s18, 1
    %p67 = por %p65, %p66
    %p69 = scmp.ne.s32.totalorder %s52, %s68
    %p70 = scmp.eq.s32.totalorder %s18, 0
    %p71 = por %p69, %p70
    %s73 = sadd.s32 %s72, 1
    %p76 = scmp.eq.s32.totalorder %s12, 1
    %p77 = scmp.ne.s32.totalorder %s72, %s74
    %p78 = scmp.eq.s32.totalorder %s12, 0
    %p79 = por %p77, %p78
    %p80 = scmp.ne.s32.totalorder %s72, %s74
    %p81 = scmp.eq.s32.totalorder %s17, 1
    %p82 = por %p80, %p81
    %p83 = scmp.ne.s32.totalorder %s74, %s75
    %p84 = scmp.eq.s32.totalorder %s17, 0
    %p85 = por %p83, %p84
    %p86 = scmp.ne.s32.totalorder %s74, %s75
    %p87 = scmp.eq.s32.totalorder %s18, 1
    %p88 = por %p86, %p87
    %p90 = scmp.ne.s32.totalorder %s75, %s89
    %p91 = scmp.eq.s32.totalorder %s18, 0
    %p92 = por %p90, %p91
    %s94 = sadd.s32 %s93, 1
    %p97 = scmp.eq.s32.totalorder %s12, 1
    %p98 = scmp.ne.s32.totalorder %s93, %s95
    %p99 = scmp.eq.s32.totalorder %s12, 0
    %p100 = por %p98, %p99
    %p101 = scmp.ne.s32.totalorder %s93, %s95
    %p102 = scmp.eq.s32.totalorder %s17, 1
    %p103 = por %p101, %p102
    %p104 = scmp.ne.s32.totalorder %s95, %s96
    %p105 = scmp.eq.s32.totalorder %s17, 0
    %p106 = por %p104, %p105
    %p107 = scmp.ne.s32.totalorder %s95, %s96
    %p108 = scmp.eq.s32.totalorder %s18, 1
    %p109 = por %p107, %p108
    %p111 = scmp.ne.s32.totalorder %s96, %s110
    %p112 = scmp.eq.s32.totalorder %s18, 0
    %p113 = por %p111, %p112
    %s114 = ssub.s32 %s12, %s19
    %p115 = scmp.eq.s32.totalorder %s114, 0
    %s117 = sadd.s32 %s116, 1
    %s118 = scalar_select %p115, %s116, %s117
    %p121 = pneg %p115
    %p122 = scmp.eq.s32.totalorder %s12, 1
    %p123 = por %p121, %p122
    %p124 = scmp.ne.s32.totalorder %s116, %s119
    %p125 = scmp.eq.s32.totalorder %s12, 0
    %p126 = por %p124, %p125
    %p127 = scmp.ne.s32.totalorder %s116, %s119
    %p128 = scmp.eq.s32.totalorder %s17, 1
    %p129 = por %p127, %p128
    %p130 = scmp.ne.s32.totalorder %s119, %s120
    %p131 = scmp.eq.s32.totalorder %s17, 0
    %p132 = por %p130, %p131
    %p133 = scmp.ne.s32.totalorder %s119, %s120
    %p134 = scmp.eq.s32.totalorder %s18, 1
    %p135 = por %p133, %p134
    %p137 = scmp.ne.s32.totalorder %s120, %s136
    %p138 = scmp.eq.s32.totalorder %s18, 0
    %p139 = por %p137, %p138
    %s140 = ssub.s32 %s12, %s19
    %p141 = scmp.eq.s32.totalorder %s140, 0
    %s143 = sadd.s32 %s142, 1
    %s144 = scalar_select %p141, %s142, %s143
    %p147 = pneg %p141
    %p148 = scmp.eq.s32.totalorder %s12, 1
    %p149 = por %p147, %p148
    %p150 = scmp.ne.s32.totalorder %s142, %s145
    %p151 = scmp.eq.s32.totalorder %s12, 0
    %p152 = por %p150, %p151
    %p153 = scmp.ne.s32.totalorder %s142, %s145
    %p154 = scmp.eq.s32.totalorder %s17, 1
    %p155 = por %p153, %p154
    %p156 = scmp.ne.s32.totalorder %s145, %s146
    %p157 = scmp.eq.s32.totalorder %s17, 0
    %p158 = por %p156, %p157
    %p159 = scmp.ne.s32.totalorder %s145, %s146
    %p160 = scmp.eq.s32.totalorder %s18, 1
    %p161 = por %p159, %p160
    %p163 = scmp.ne.s32.totalorder %s146, %s162
    %p164 = scmp.eq.s32.totalorder %s18, 0
    %p165 = por %p163, %p164
    %p166 = scmp.le.s32.totalorder 1, %s12
    %p167 = scmp.lt.s32.totalorder %s12, 3
    %p168 = pnand %p166, %p167
    %p169 = pneg %p168
    // Predicated region
    $region9: #{ffc_bn_act_forward.3} parent=5 // pred_check
      _
    $region10: #{ffc_bn_act_forward.3} parent=5 // pred_check_branch
      %171 = sbr.rel (%p168) target = $region12
    $region11: #{ffc_bn_act_forward.3} parent=5 // pred_region
      %s172 = ssub.s32 %s12, 1
      // Predicated region
      $region13: #{ffc_bn_act_forward.3} parent=11 // pred_check
        %p173 = pneg %p85
      $region14: #{ffc_bn_act_forward.3} parent=11 // pred_check_branch
        %175 = sbr.rel (%p173) target = $region16
      $region15: #{ffc_bn_act_forward.3} parent=11 // pred_region
        _
      $region16: #{ffc_bn_act_forward.3} parent=11 // pred_fallthru
        _
      // Predicated region
      $region17: #{ffc_bn_act_forward.3} parent=11 // pred_check
        %p176 = pneg %p106
      $region18: #{ffc_bn_act_forward.3} parent=11 // pred_check_branch
        %178 = sbr.rel (%p176) target = $region20
      $region19: #{ffc_bn_act_forward.3} parent=11 // pred_region
        _
      $region20: #{ffc_bn_act_forward.3} parent=11 // pred_fallthru
        _
    $region12: #{ffc_bn_act_forward.3} parent=5 // pred_fallthru
      _
    %p179 = scmp.lt.s32.totalorder %s12, 2
    // Predicated region
    $region21: #{ffc_bn_act_forward.3} parent=5 // pred_check
      %p180 = pneg %p179
    $region22: #{ffc_bn_act_forward.3} parent=5 // pred_check_branch
      %182 = sbr.rel (%p180) target = $region24
    $region23: #{ffc_bn_act_forward.3} parent=5 // pred_region
      // Predicated region
      $region25: #{ffc_bn_act_forward.3} parent=23 // pred_check
        %p183 = pneg %p32
      $region26: #{ffc_bn_act_forward.3} parent=23 // pred_check_branch
        %185 = sbr.rel (%p183) target = $region28
      $region27: #{ffc_bn_act_forward.3} parent=23 // pred_region
        %s186 = smul.u32 2, %s12
        %p187 = scmp.lt.s32.totalorder %s186, 3
        %s188 = scalar_select %p187, %s186, 3
        %s189 = smul.addr %s188, 4
        %s190 = scalar_lea.vmem %s0, %s189
        %s191 = smul.u32 2, %s12
      $region28: #{ffc_bn_act_forward.3} parent=23 // pred_fallthru
        _
      // Predicated region
      $region29: #{ffc_bn_act_forward.3} parent=23 // pred_check
        %p192 = pneg %p58
      $region30: #{ffc_bn_act_forward.3} parent=23 // pred_check_branch
        %194 = sbr.rel (%p192) target = $region32
      $region31: #{ffc_bn_act_forward.3} parent=23 // pred_region
        %s195 = smul.u32 2, %s12
        %p196 = scmp.lt.s32.totalorder %s195, 3
        %s197 = scalar_select %p196, %s195, 3
        %s198 = smul.addr %s197, 4
        %s199 = scalar_lea.vmem %s1, %s198
        %s200 = smul.u32 2, %s12
      $region32: #{ffc_bn_act_forward.3} parent=23 // pred_fallthru
        _
    $region24: #{ffc_bn_act_forward.3} parent=5 // pred_fallthru
      _
    %p201 = scmp.le.s32.totalorder 1, %s12
    %p202 = scmp.lt.s32.totalorder %s12, 3
    %p203 = pnand %p201, %p202
    %p204 = pneg %p203
    // Predicated region
    $region33: #{ffc_bn_act_forward.3} parent=5 // pred_check
      _
    $region34: #{ffc_bn_act_forward.3} parent=5 // pred_check_branch
      %206 = sbr.rel (%p203) target = $region36
    $region35: #{ffc_bn_act_forward.3} parent=5 // pred_region
      %s207 = ssub.s32 %s12, 1
      %s208 = smul.u32 2, %s17
      %p209 = scmp.lt.s32.totalorder %s208, 3
      %s210 = scalar_select %p209, %s208, 3
      %s211 = smul.addr %s210, 4
      %s212 = scalar_lea.vmem %s0, %s211
      %p213 = pneg %p38
      %p214 = pneg %p35
      %s215 = smul.u32 2, %s17
      %p216 = scmp.lt.s32.totalorder %s215, 3
      %s217 = scalar_select %p216, %s215, 3
      %s218 = smul.addr %s217, 4
      %s219 = scalar_lea.vmem %s1, %s218
      %p220 = pneg %p64
      %p221 = pneg %p61
      %p222 = pneg %p85
      %p223 = pneg %p82
      %p224 = pneg %p106
      %p225 = pneg %p103
      %p226 = pneg %p132
      %p227 = pneg %p129
      %s228 = smul.u32 2, %s17
      %p229 = scmp.lt.s32.totalorder %s228, 3
      %s230 = scalar_select %p229, %s228, 3
      %s231 = smul.addr %s230, 4
      %s232 = scalar_lea.vmem %s4, %s231
      %p233 = pneg %p158
      %p234 = pneg %p155
      %s235 = smul.u32 2, %s17
      %p236 = scmp.lt.s32.totalorder %s235, 3
      %s237 = scalar_select %p236, %s235, 3
      %s238 = smul.addr %s237, 2
      %s239 = scalar_lea.vmem %s5, %s238
      %s240 = smul.u32 2, %s17
      %p241 = scmp.lt.s32.totalorder %s240, 3
      %s242 = scalar_select %p241, %s240, 3
      %s243 = smul.addr %s242, 4
      %s244 = scalar_lea.vmem %s0, %s243
      %s245 = smul.u32 2, %s17
      %s246 = smul.u32 2, %s17
      %p247 = scmp.lt.s32.totalorder %s246, 3
      %s248 = scalar_select %p247, %s246, 3
      %s249 = smul.addr %s248, 4
      %s250 = scalar_lea.vmem %s1, %s249
      %s251 = smul.u32 2, %s17
      %s252 = smul.u32 2, %s17
      %p253 = scmp.lt.s32.totalorder %s252, 3
      %s254 = scalar_select %p253, %s252, 3
      %s255 = smul.addr %s254, 4
      %s256 = scalar_lea.vmem %s4, %s255
      %s257 = smul.u32 2, %s17
      %s258 = smul.u32 2, %s17
      %p259 = scmp.lt.s32.totalorder %s258, 3
      %s260 = scalar_select %p259, %s258, 3
      %s261 = smul.addr %s260, 2
      %s262 = scalar_lea.vmem %s5, %s261
      %s263 = smul.u32 2, %s17
      %v264 = vld [vmem:[%s244] sm:$0xff]
      %v265 = vld [vmem:[%s250] sm:$0xff]
      %v267 = vcombine.high %v264, %v264
      %v270 = vcombine.low %v265, %v265
      %vm272 = vcmask 1043456
      %v273 = vsel %vm272, %v264, %v270
      %v274 = vsel %vm272, %v267, %v265
      %v275 = vld [vmem:[%s2] sm:$0x3f]
      %v276 = vld [vmem:[%s3] sm:$0x3f]
      %278 = vset.pattern.permute.xlu0 0
      %279 = vperm.xlu0 %278, %v276
      %v280 = vpop.permute.xlu0 %279
      %vm282 = vcmask 64512
      %v284 = vsel %vm282, %v275, 0
      %286 = vmatprep.subr.mxu0 %v274
      %287 = vmatpush1.msra.mxu0 %v273
      %288 = vmatprep.subr.mxu0 0.0
      %289 = vmatpush1.msra.mxu0 0.0
      %290 = vmatprep.subr.mxu0 0.0
      %291 = vmatpush1.msra.mxu0 0.0
      %292 = vmatprep.subr.mxu0 0.0
      %293 = vmatpush1.msra.mxu0 0.0
      %294 = vmatprep.subr.mxu0 0.0
      %295 = vmatpush1.msra.mxu0 0.0
      %296 = vmatprep.subr.mxu0 0.0
      %297 = vmatpush1.msra.mxu0 0.0
      %298 = vmatprep.subr.mxu0 0.0
      %299 = vmatpush1.msra.mxu0 0.0
      %300 = vmatprep.subr.mxu0 0.0
      %301 = vmatpush1.msra.mxu0 0.0
      %302 = vmatprep.subr.mxu0 0.0
      %303 = vmatpush1.msra.mxu0 0.0
      %304 = vmatprep.subr.mxu0 0.0
      %305 = vmatpush1.msra.mxu0 0.0
      %306 = vmatprep.subr.mxu0 0.0
      %307 = vmatpush1.msra.mxu0 0.0
      %308 = vmatprep.subr.mxu0 0.0
      %309 = vmatpush1.msra.mxu0 0.0
      %310 = vmatprep.subr.mxu0 0.0
      %311 = vmatpush1.msra.mxu0 0.0
      %312 = vmatprep.subr.mxu0 0.0
      %313 = vmatpush1.msra.mxu0 0.0
      %314 = vmatprep.subr.mxu0 0.0
      %315 = vmatpush1.msra.mxu0 0.0
      %316 = vmatprep.subr.mxu0 0.0
      %317 = vmatpush1.msra.mxu0 0.0
      %318 = vmatprep.subr.mxu0 0.0
      %319 = vmatpush1.msra.mxu0 0.0
      %320 = vmatprep.subr.mxu0 0.0
      %321 = vmatpush1.msra.mxu0 0.0
      %322 = vmatprep.subr.mxu0 0.0
      %323 = vmatpush1.msra.mxu0 0.0
      %324 = vmatprep.subr.mxu0 0.0
      %325 = vmatpush1.msra.mxu0 0.0
      %326 = vmatprep.subr.mxu0 0.0
      %327 = vmatpush1.msra.mxu0 0.0
      %328 = vmatprep.subr.mxu0 0.0
      %329 = vmatpush1.msra.mxu0 0.0
      %330 = vmatprep.subr.mxu0 0.0
      %331 = vmatpush1.msra.mxu0 0.0
      %332 = vmatprep.subr.mxu0 0.0
      %333 = vmatpush1.msra.mxu0 0.0
      %334 = vmatprep.subr.mxu0 0.0
      %335 = vmatpush1.msra.mxu0 0.0
      %336 = vmatprep.subr.mxu0 0.0
      %337 = vmatpush1.msra.mxu0 0.0
      %338 = vmatprep.subr.mxu0 0.0
      %339 = vmatpush1.msra.mxu0 0.0
      %340 = vmatprep.subr.mxu0 0.0
      %341 = vmatpush1.msra.mxu0 0.0
      %342 = vmatprep.subr.mxu0 0.0
      %343 = vmatpush1.msra.mxu0 0.0
      %344 = vmatprep.subr.mxu0 0.0
      %345 = vmatpush1.msra.mxu0 0.0
      %346 = vmatprep.subr.mxu0 0.0
      %347 = vmatpush1.msra.mxu0 0.0
      %348 = vmatprep.subr.mxu0 0.0
      %349 = vmatpush1.msra.mxu0 0.0
      %350 = vmatprep.mubr.f32.mxu0 0.0
      %351 = vmatmul.mubr.f32.gmra.mrb[0].mxu0 %v284
      %v352 = vpop.f32.mrb[0].mxu0
      %v353 = vadd.f32 %v280, %v352
      %v354 = vpop.f32.mrb[0].mxu0
      %v355 = vadd.f32 %v280, %v354
      %356 = vdwg.mxu0
      %v359 = vcombine.low %v353, %v355
      %361 = vst [vmem:[%s256] sm:$0xff] %v359
      %v362 = vmax.f32 %v353, 0.0
      %v363 = vmax.f32 %v355, 0.0
      %v366 = vcombine.high %v362, %v363
      %v368 = vunpack.c.l.s4 1983009808
      %v369 = vunpack.c.0.s8 %v368
      %v370 = vlaneseq
      %v371 = vshrl.u32 %v370, 7
      %v372 = vsub.s32 %v369, %v371
      %v373 = vrot.slane %v366, %v372
      %375 = vst [vmem:[%s262] sm:$0xf] %v373
      %s376 = smul.u32 2, %s17
      %p377 = scmp.lt.s32.totalorder %s376, 3
      %s378 = scalar_select %p377, %s376, 3
      %s379 = smul.addr %s378, 4
      %s380 = scalar_lea.vmem %s4, %s379
      %s381 = smul.u32 2, %s17
      %p382 = scmp.lt.s32.totalorder %s381, 3
      %s383 = scalar_select %p382, %s381, 3
      %s384 = smul.addr %s383, 2
      %s385 = scalar_lea.vmem %s5, %s384
      // Predicated region
      $region37: #{ffc_bn_act_forward.3} parent=35 // pred_check
        %p386 = pneg %p129
      $region38: #{ffc_bn_act_forward.3} parent=35 // pred_check_branch
        %388 = sbr.rel (%p386) target = $region40
      $region39: #{ffc_bn_act_forward.3} parent=35 // pred_region
        %s389 = smul.u32 2, %s17
      $region40: #{ffc_bn_act_forward.3} parent=35 // pred_fallthru
        _
      // Predicated region
      $region41: #{ffc_bn_act_forward.3} parent=35 // pred_check
        %p390 = pneg %p155
      $region42: #{ffc_bn_act_forward.3} parent=35 // pred_check_branch
        %392 = sbr.rel (%p390) target = $region44
      $region43: #{ffc_bn_act_forward.3} parent=35 // pred_region
        %s393 = smul.u32 2, %s17
      $region44: #{ffc_bn_act_forward.3} parent=35 // pred_fallthru
        _
    $region36: #{ffc_bn_act_forward.3} parent=5 // pred_fallthru
      _
    %p394 = scmp.le.s32.totalorder 2, %s12
    // Predicated region
    $region45: #{ffc_bn_act_forward.3} parent=5 // pred_check
      %p395 = pneg %p394
    $region46: #{ffc_bn_act_forward.3} parent=5 // pred_check_branch
      %397 = sbr.rel (%p395) target = $region48
    $region47: #{ffc_bn_act_forward.3} parent=5 // pred_region
      %s398 = ssub.s32 %s12, 2
      // Predicated region
      $region49: #{ffc_bn_act_forward.3} parent=47 // pred_check
        %p399 = pneg %p135
      $region50: #{ffc_bn_act_forward.3} parent=47 // pred_check_branch
        %401 = sbr.rel (%p399) target = $region52
      $region51: #{ffc_bn_act_forward.3} parent=47 // pred_region
        %s402 = smul.u32 2, %s18
        %p403 = scmp.lt.s32.totalorder %s402, 3
        %s404 = scalar_select %p403, %s402, 3
        %s405 = smul.addr %s404, 4
        %s406 = scalar_lea.vmem %s4, %s405
      $region52: #{ffc_bn_act_forward.3} parent=47 // pred_fallthru
        _
      // Predicated region
      $region53: #{ffc_bn_act_forward.3} parent=47 // pred_check
        %p407 = pneg %p161
      $region54: #{ffc_bn_act_forward.3} parent=47 // pred_check_branch
        %409 = sbr.rel (%p407) target = $region56
      $region55: #{ffc_bn_act_forward.3} parent=47 // pred_region
        %s410 = smul.u32 2, %s18
        %p411 = scmp.lt.s32.totalorder %s410, 3
        %s412 = scalar_select %p411, %s410, 3
        %s413 = smul.addr %s412, 2
        %s414 = scalar_lea.vmem %s5, %s413
      $region56: #{ffc_bn_act_forward.3} parent=47 // pred_fallthru
        _
    $region48: #{ffc_bn_act_forward.3} parent=5 // pred_fallthru
      _
  $region6: #{ffc_bn_act_forward.3} parent=0 // loop_footer
    %s16 = sadd.s32 1, %s12
  $region7: #{ffc_bn_act_forward.3} parent=0 // loop_footer_branch
    %11 = sbr.rel target = $region3
  $region8: #{ffc_bn_act_forward.3} parent=0 // loop_exit
    _

// kernel: reverse.1
$region0: #{reverse.1}
  %s0 = inlined_call_operand.vmem [shape: f32[2,2,16,7], index: 0, kind: input, shape index: {}]
  %s1 = inlined_call_operand.vmem [shape: f32[2,2,16,7], index: 1, kind: output, shape index: {}]
  $region1: #{reverse.1} parent=0
    #allocation0 [shape = 'u8[32768]{0}', space=vmem, size = 0x8000, scoped, tag = 'operand span for operand 0']
    #allocation1 [shape = 'u8[16384]{0}', space=vmem, size = 0x4000, scoped, tag = 'operand span for operand 1']
    %s2 = scalar_lea.vmem [#allocation0], 8
    // Predicated region
    $region2: #{reverse.1} parent=1 // pred_check
      _
    $region3: #{reverse.1} parent=1 // pred_check_branch
      %4 = sbr.rel (0) target = $region5
    $region4: #{reverse.1} parent=1 // pred_region
      // Predicated region
      $region6: #{reverse.1} parent=4 // pred_check
        _
      $region7: #{reverse.1} parent=4 // pred_check_branch
        %6 = sbr.rel (0) target = $region9
      $region8: #{reverse.1} parent=4 // pred_region
        // Predicated region
        $region21: #{reverse.1} parent=8 // pred_check
          _
        $region22: #{reverse.1} parent=8 // pred_check_branch
          %27 = sbr.rel (0) target = $region24
        $region23: #{reverse.1} parent=8 // pred_region
          loop: start=0, step=1, limit=1
          $region25: #{reverse.1} parent=23 // loop_pre_header
            _
          $region26: #{reverse.1} parent=23 // loop_header
            %s29 = sphi 0, %s33
            %p30 = scmp.ge.s32.totalorder %s29, 1
            %s34 = sphi %s0, %s0
            %s35 = sphi %s2, %s2
          $region27: #{reverse.1} parent=23 // loop_header_branch
            %32 = sbr.rel (%p30) target = $region31
          $region28: #{reverse.1} parent=23 // loop_body
            %v36 = vld [vmem:[%s34] sm:$0xff]
            %37 = vst [vmem:[%s35] sm:$0xff] %v36
            %v38 = vld [vmem:[%s34 + $0x8] sm:$0xff]
            %39 = vst [vmem:[%s35 + $0x10] sm:$0xff] %v38
            %v40 = vld [vmem:[%s34 + $0x10] sm:$0xff]
            %41 = vst [vmem:[%s35 + $0x20] sm:$0xff] %v40
            %v42 = vld [vmem:[%s34 + $0x18] sm:$0xff]
            %43 = vst [vmem:[%s35 + $0x30] sm:$0xff] %v42
          $region29: #{reverse.1} parent=23 // loop_footer
            %s33 = sadd.s32 1, %s29
          $region30: #{reverse.1} parent=23 // loop_footer_branch
            %28 = sbr.rel target = $region26
          $region31: #{reverse.1} parent=23 // loop_exit
            _
        $region24: #{reverse.1} parent=8 // pred_fallthru
          _
        // Predicated region
        $region32: #{reverse.1} parent=8 // pred_check
          _
        $region33: #{reverse.1} parent=8 // pred_check_branch
          %45 = sbr.rel target = $region35
        $region34: #{reverse.1} parent=8 // pred_region
          _
        $region35: #{reverse.1} parent=8 // pred_fallthru
          _
      $region9: #{reverse.1} parent=4 // pred_fallthru
        _
      // Predicated region
      $region10: #{reverse.1} parent=4 // pred_check
        _
      $region11: #{reverse.1} parent=4 // pred_check_branch
        %8 = sbr.rel target = $region13
      $region12: #{reverse.1} parent=4 // pred_region
        loop: start=0, step=1, limit=1
        $region14: #{reverse.1} parent=12 // loop_pre_header
          _
        $region15: #{reverse.1} parent=12 // loop_header
          %s11 = sphi 0, %s15
          %p12 = scmp.ge.s32.totalorder %s11, 1
          %s16 = sphi %s0, %s0
          %s17 = sphi %s2, %s2
        $region16: #{reverse.1} parent=12 // loop_header_branch
          %14 = sbr.rel (%p12) target = $region20
        $region17: #{reverse.1} parent=12 // loop_body
          %v18 = vld [vmem:[%s16] sm:$0xff]
          %19 = vst [vmem:[%s17] sm:$0xff] %v18
          %v20 = vld [vmem:[%s16 + $0x8] sm:$0xff]
          %21 = vst [vmem:[%s17 + $0x10] sm:$0xff] %v20
          %v22 = vld [vmem:[%s16 + $0x10] sm:$0xff]
          %23 = vst [vmem:[%s17 + $0x20] sm:$0xff] %v22
          %v24 = vld [vmem:[%s16 + $0x18] sm:$0xff]
          %25 = vst [vmem:[%s17 + $0x30] sm:$0xff] %v24
        $region18: #{reverse.1} parent=12 // loop_footer
          %s15 = sadd.s32 1, %s11
        $region19: #{reverse.1} parent=12 // loop_footer_branch
          %10 = sbr.rel target = $region15
        $region20: #{reverse.1} parent=12 // loop_exit
          _
      $region13: #{reverse.1} parent=4 // pred_fallthru
        _
    $region5: #{reverse.1} parent=1 // pred_fallthru
      _
    %46 = vnop
    %s47 = scalar_lea.vmem [#allocation0], 7
    %v48 = vld [vmem:[%s47] ss:$-1 sm:$0xff]
    %v49 = vrot.slane %v48, 1
    %50 = vst [vmem:[#allocation1] sm:$0xff] %v49
    %s51 = scalar_lea.vmem [#allocation0], 8
    %s52 = scalar_lea.vmem %s51, 7 [#allocation0]
    %v53 = vld [vmem:[%s52] ss:$-1 sm:$0xff]
    %v54 = vrot.slane %v53, 1
    %v55 = vlaneseq
    %v56 = vshrl.u32 %v55, 7
    %vm57 = vcmp.lt.s32.totalorder %v56, 7
    %58 = vst.msk [vmem:[#allocation1] sm:$0xff] %vm57, %v54
    %s59 = scalar_lea.vmem [#allocation1], 8
    %s60 = scalar_lea.vmem [#allocation0], 16
    %s61 = scalar_lea.vmem %s60, 7 [#allocation0]
    %v62 = vld [vmem:[%s61] ss:$-1 sm:$0xff]
    %v63 = vrot.slane %v62, 1
    %64 = vst [vmem:[%s59] sm:$0xff] %v63
    %s65 = scalar_lea.vmem %s60, 8 [#allocation0]
    %s66 = scalar_lea.vmem %s65, 7 [#allocation0]
    %v67 = vld [vmem:[%s66] ss:$-1 sm:$0xff]
    %v68 = vrot.slane %v67, 1
    %v69 = vlaneseq
    %v70 = vshrl.u32 %v69, 7
    %vm71 = vcmp.lt.s32.totalorder %v70, 7
    %72 = vst.msk [vmem:[%s59] sm:$0xff] %vm71, %v68
    %s73 = scalar_lea.vmem [#allocation1], 16
    %s74 = scalar_lea.vmem [#allocation0], 32
    %s75 = scalar_lea.vmem %s74, 7 [#allocation0]
    %v76 = vld [vmem:[%s75] ss:$-1 sm:$0xff]
    %v77 = vrot.slane %v76, 1
    %78 = vst [vmem:[%s73] sm:$0xff] %v77
    %s79 = scalar_lea.vmem %s74, 8 [#allocation0]
    %s80 = scalar_lea.vmem %s79, 7 [#allocation0]
    %v81 = vld [vmem:[%s80] ss:$-1 sm:$0xff]
    %v82 = vrot.slane %v81, 1
    %v83 = vlaneseq
    %v84 = vshrl.u32 %v83, 7
    %vm85 = vcmp.lt.s32.totalorder %v84, 7
    %86 = vst.msk [vmem:[%s73] sm:$0xff] %vm85, %v82
    %s87 = scalar_lea.vmem [#allocation1], 24
    %s88 = scalar_lea.vmem [#allocation0], 48
    %s89 = scalar_lea.vmem %s88, 7 [#allocation0]
    %v90 = vld [vmem:[%s89] ss:$-1 sm:$0xff]
    %v91 = vrot.slane %v90, 1
    %92 = vst [vmem:[%s87] sm:$0xff] %v91
    %s93 = scalar_lea.vmem %s88, 8 [#allocation0]
    %s94 = scalar_lea.vmem %s93, 7 [#allocation0]
    %v95 = vld [vmem:[%s94] ss:$-1 sm:$0xff]
    %v96 = vrot.slane %v95, 1
    %v97 = vlaneseq
    %v98 = vshrl.u32 %v97, 7
    %vm99 = vcmp.lt.s32.totalorder %v98, 7
    %100 = vst.msk [vmem:[%s87] sm:$0xff] %vm99, %v96
    // Predicated region
    $region36: #{reverse.1} parent=1 // pred_check
      _
    $region37: #{reverse.1} parent=1 // pred_check_branch
      %102 = sbr.rel (0) target = $region39
    $region38: #{reverse.1} parent=1 // pred_region
      // Predicated region
      $region40: #{reverse.1} parent=38 // pred_check
        _
      $region41: #{reverse.1} parent=38 // pred_check_branch
        %104 = sbr.rel (0) target = $region43
      $region42: #{reverse.1} parent=38 // pred_region
        // Predicated region
        $region55: #{reverse.1} parent=42 // pred_check
          _
        $region56: #{reverse.1} parent=42 // pred_check_branch
          %125 = sbr.rel (0) target = $region58
        $region57: #{reverse.1} parent=42 // pred_region
          loop: start=0, step=1, limit=1
          $region59: #{reverse.1} parent=57 // loop_pre_header
            _
          $region60: #{reverse.1} parent=57 // loop_header
            %s127 = sphi 0, %s131
            %p128 = scmp.ge.s32.totalorder %s127, 1
            %s132 = sphi [#allocation1], [#allocation1]
            %s133 = sphi %s1, %s1
          $region61: #{reverse.1} parent=57 // loop_header_branch
            %130 = sbr.rel (%p128) target = $region65
          $region62: #{reverse.1} parent=57 // loop_body
            %v134 = vld [vmem:[%s132] sm:$0xff]
            %135 = vst [vmem:[%s133] sm:$0xff] %v134
            %v136 = vld [vmem:[%s132 + $0x8] sm:$0xff]
            %137 = vst [vmem:[%s133 + $0x8] sm:$0xff] %v136
            %v138 = vld [vmem:[%s132 + $0x10] sm:$0xff]
            %139 = vst [vmem:[%s133 + $0x10] sm:$0xff] %v138
            %v140 = vld [vmem:[%s132 + $0x18] sm:$0xff]
            %141 = vst [vmem:[%s133 + $0x18] sm:$0xff] %v140
          $region63: #{reverse.1} parent=57 // loop_footer
            %s131 = sadd.s32 1, %s127
          $region64: #{reverse.1} parent=57 // loop_footer_branch
            %126 = sbr.rel target = $region60
          $region65: #{reverse.1} parent=57 // loop_exit
            _
        $region58: #{reverse.1} parent=42 // pred_fallthru
          _
        // Predicated region
        $region66: #{reverse.1} parent=42 // pred_check
          _
        $region67: #{reverse.1} parent=42 // pred_check_branch
          %143 = sbr.rel target = $region69
        $region68: #{reverse.1} parent=42 // pred_region
          _
        $region69: #{reverse.1} parent=42 // pred_fallthru
          _
      $region43: #{reverse.1} parent=38 // pred_fallthru
        _
      // Predicated region
      $region44: #{reverse.1} parent=38 // pred_check
        _
      $region45: #{reverse.1} parent=38 // pred_check_branch
        %106 = sbr.rel target = $region47
      $region46: #{reverse.1} parent=38 // pred_region
        loop: start=0, step=1, limit=1
        $region48: #{reverse.1} parent=46 // loop_pre_header
          _
        $region49: #{reverse.1} parent=46 // loop_header
          %s109 = sphi 0, %s113
          %p110 = scmp.ge.s32.totalorder %s109, 1
          %s114 = sphi [#allocation1], [#allocation1]
          %s115 = sphi %s1, %s1
        $region50: #{reverse.1} parent=46 // loop_header_branch
          %112 = sbr.rel (%p110) target = $region54
        $region51: #{reverse.1} parent=46 // loop_body
          %v116 = vld [vmem:[%s114] sm:$0xff]
          %117 = vst [vmem:[%s115] sm:$0xff] %v116
          %v118 = vld [vmem:[%s114 + $0x8] sm:$0xff]
          %119 = vst [vmem:[%s115 + $0x8] sm:$0xff] %v118
          %v120 = vld [vmem:[%s114 + $0x10] sm:$0xff]
          %121 = vst [vmem:[%s115 + $0x10] sm:$0xff] %v120
          %v122 = vld [vmem:[%s114 + $0x18] sm:$0xff]
          %123 = vst [vmem:[%s115 + $0x18] sm:$0xff] %v122
        $region52: #{reverse.1} parent=46 // loop_footer
          %s113 = sadd.s32 1, %s109
        $region53: #{reverse.1} parent=46 // loop_footer_branch
          %108 = sbr.rel target = $region49
        $region54: #{reverse.1} parent=46 // loop_exit
          _
      $region47: #{reverse.1} parent=38 // pred_fallthru
        _
    $region39: #{reverse.1} parent=1 // pred_fallthru
      _
    %144 = vnop

// kernel: ffc_bn_act_forward.4
$region0: #{ffc_bn_act_forward.4}
  #allocation0 [shape = 'u32[]', space=smem, size = 0x4, offset = 0x4, fixed_abs, tag = 'smem constant byte address 0x4 - core index']
  #allocation1 [shape = 'u32[144,128]{1,0:T(1,128)}', space=vmem, size = 0x12000, scoped, tag = 'internal scratch']
  %s0 = inlined_call_operand.vmem [shape: f32[2,384], index: 0, kind: input, shape index: {}]
  %s1 = inlined_call_operand.vmem [shape: f32[2,384], index: 1, kind: input, shape index: {}]
  %s2 = inlined_call_operand.vmem [shape: f32[4,4], index: 2, kind: input, shape index: {}]
  %s3 = inlined_call_operand.vmem [shape: f32[4,1], index: 3, kind: input, shape index: {}]
  %s4 = inlined_call_operand.vmem [shape: f32[2,384], index: 4, kind: output, shape index: {0}]
  %s5 = inlined_call_operand.vmem [shape: f32[2,384], index: 5, kind: output, shape index: {1}]
  %6 = xla_tuple %s4, %s5
  %s7 = sld [smem:[#allocation0]]
  $region57: #{ffc_bn_act_forward.4} parent=0
    _
  %s9 = ssub.s32 1, %s7
  %s10 = scalar_select 0, %s9, %s7
  loop: start=0, step=1, limit=5
  $region2: #{ffc_bn_act_forward.4} parent=0 // loop_pre_header
    _
  $region3: #{ffc_bn_act_forward.4} parent=0 // loop_header
    %s12 = sphi 0, %s16
    %p13 = scmp.ge.s32.totalorder %s12, 5
    %s22 = sphi 0, %s24
    %s25 = sphi 0, %s22
    %s26 = sphi 0, %s25
    %s42 = sphi 0, %s26
    %s48 = sphi 0, %s50
    %s51 = sphi 0, %s48
    %s52 = sphi 0, %s51
    %s68 = sphi 0, %s52
    %s72 = sphi 0, %s72
    %s74 = sphi 0, %s72
    %s75 = sphi 0, %s74
    %s89 = sphi 0, %s75
    %s93 = sphi 0, %s93
    %s95 = sphi 0, %s93
    %s96 = sphi 0, %s95
    %s110 = sphi 0, %s96
    %s116 = sphi 0, %s118
    %s119 = sphi 0, %s116
    %s120 = sphi 0, %s119
    %s136 = sphi 0, %s120
    %s142 = sphi 0, %s144
    %s145 = sphi 0, %s142
    %s146 = sphi 0, %s145
    %s162 = sphi 0, %s146
  $region4: #{ffc_bn_act_forward.4} parent=0 // loop_header_branch
    %15 = sbr.rel (%p13) target = $region8
  $region5: #{ffc_bn_act_forward.4} parent=0 // loop_body
    %s17 = ssub.s32 %s12, 1
    %s18 = ssub.s32 %s12, 2
    %s19 = sadd.s32 %s12, 1
    %s20 = ssub.s32 %s12, %s19
    %p21 = scmp.eq.s32.totalorder %s20, 0
    %s23 = sadd.s32 %s22, 1
    %s24 = scalar_select %p21, %s22, %s23
    %p27 = pneg %p21
    %p28 = scmp.eq.s32.totalorder %s12, 2
    %p29 = por %p27, %p28
    %p30 = scmp.ne.s32.totalorder %s22, %s25
    %p31 = scmp.eq.s32.totalorder %s12, 0
    %p32 = por %p30, %p31
    %p33 = scmp.ne.s32.totalorder %s22, %s25
    %p34 = scmp.eq.s32.totalorder %s17, 2
    %p35 = por %p33, %p34
    %p36 = scmp.ne.s32.totalorder %s25, %s26
    %p37 = scmp.eq.s32.totalorder %s17, 0
    %p38 = por %p36, %p37
    %p39 = scmp.ne.s32.totalorder %s25, %s26
    %p40 = scmp.eq.s32.totalorder %s18, 2
    %p41 = por %p39, %p40
    %p43 = scmp.ne.s32.totalorder %s26, %s42
    %p44 = scmp.eq.s32.totalorder %s18, 0
    %p45 = por %p43, %p44
    %s46 = ssub.s32 %s12, %s19
    %p47 = scmp.eq.s32.totalorder %s46, 0
    %s49 = sadd.s32 %s48, 1
    %s50 = scalar_select %p47, %s48, %s49
    %p53 = pneg %p47
    %p54 = scmp.eq.s32.totalorder %s12, 2
    %p55 = por %p53, %p54
    %p56 = scmp.ne.s32.totalorder %s48, %s51
    %p57 = scmp.eq.s32.totalorder %s12, 0
    %p58 = por %p56, %p57
    %p59 = scmp.ne.s32.totalorder %s48, %s51
    %p60 = scmp.eq.s32.totalorder %s17, 2
    %p61 = por %p59, %p60
    %p62 = scmp.ne.s32.totalorder %s51, %s52
    %p63 = scmp.eq.s32.totalorder %s17, 0
    %p64 = por %p62, %p63
    %p65 = scmp.ne.s32.totalorder %s51, %s52
    %p66 = scmp.eq.s32.totalorder %s18, 2
    %p67 = por %p65, %p66
    %p69 = scmp.ne.s32.totalorder %s52, %s68
    %p70 = scmp.eq.s32.totalorder %s18, 0
    %p71 = por %p69, %p70
    %s73 = sadd.s32 %s72, 1
    %p76 = scmp.eq.s32.totalorder %s12, 2
    %p77 = scmp.ne.s32.totalorder %s72, %s74
    %p78 = scmp.eq.s32.totalorder %s12, 0
    %p79 = por %p77, %p78
    %p80 = scmp.ne.s32.totalorder %s72, %s74
    %p81 = scmp.eq.s32.totalorder %s17, 2
    %p82 = por %p80, %p81
    %p83 = scmp.ne.s32.totalorder %s74, %s75
    %p84 = scmp.eq.s32.totalorder %s17, 0
    %p85 = por %p83, %p84
    %p86 = scmp.ne.s32.totalorder %s74, %s75
    %p87 = scmp.eq.s32.totalorder %s18, 2
    %p88 = por %p86, %p87
    %p90 = scmp.ne.s32.totalorder %s75, %s89
    %p91 = scmp.eq.s32.totalorder %s18, 0
    %p92 = por %p90, %p91
    %s94 = sadd.s32 %s93, 1
    %p97 = scmp.eq.s32.totalorder %s12, 2
    %p98 = scmp.ne.s32.totalorder %s93, %s95
    %p99 = scmp.eq.s32.totalorder %s12, 0
    %p100 = por %p98, %p99
    %p101 = scmp.ne.s32.totalorder %s93, %s95
    %p102 = scmp.eq.s32.totalorder %s17, 2
    %p103 = por %p101, %p102
    %p104 = scmp.ne.s32.totalorder %s95, %s96
    %p105 = scmp.eq.s32.totalorder %s17, 0
    %p106 = por %p104, %p105
    %p107 = scmp.ne.s32.totalorder %s95, %s96
    %p108 = scmp.eq.s32.totalorder %s18, 2
    %p109 = por %p107, %p108
    %p111 = scmp.ne.s32.totalorder %s96, %s110
    %p112 = scmp.eq.s32.totalorder %s18, 0
    %p113 = por %p111, %p112
    %s114 = ssub.s32 %s12, %s19
    %p115 = scmp.eq.s32.totalorder %s114, 0
    %s117 = sadd.s32 %s116, 1
    %s118 = scalar_select %p115, %s116, %s117
    %p121 = pneg %p115
    %p122 = scmp.eq.s32.totalorder %s12, 2
    %p123 = por %p121, %p122
    %p124 = scmp.ne.s32.totalorder %s116, %s119
    %p125 = scmp.eq.s32.totalorder %s12, 0
    %p126 = por %p124, %p125
    %p127 = scmp.ne.s32.totalorder %s116, %s119
    %p128 = scmp.eq.s32.totalorder %s17, 2
    %p129 = por %p127, %p128
    %p130 = scmp.ne.s32.totalorder %s119, %s120
    %p131 = scmp.eq.s32.totalorder %s17, 0
    %p132 = por %p130, %p131
    %p133 = scmp.ne.s32.totalorder %s119, %s120
    %p134 = scmp.eq.s32.totalorder %s18, 2
    %p135 = por %p133, %p134
    %p137 = scmp.ne.s32.totalorder %s120, %s136
    %p138 = scmp.eq.s32.totalorder %s18, 0
    %p139 = por %p137, %p138
    %s140 = ssub.s32 %s12, %s19
    %p141 = scmp.eq.s32.totalorder %s140, 0
    %s143 = sadd.s32 %s142, 1
    %s144 = scalar_select %p141, %s142, %s143
    %p147 = pneg %p141
    %p148 = scmp.eq.s32.totalorder %s12, 2
    %p149 = por %p147, %p148
    %p150 = scmp.ne.s32.totalorder %s142, %s145
    %p151 = scmp.eq.s32.totalorder %s12, 0
    %p152 = por %p150, %p151
    %p153 = scmp.ne.s32.totalorder %s142, %s145
    %p154 = scmp.eq.s32.totalorder %s17, 2
    %p155 = por %p153, %p154
    %p156 = scmp.ne.s32.totalorder %s145, %s146
    %p157 = scmp.eq.s32.totalorder %s17, 0
    %p158 = por %p156, %p157
    %p159 = scmp.ne.s32.totalorder %s145, %s146
    %p160 = scmp.eq.s32.totalorder %s18, 2
    %p161 = por %p159, %p160
    %p163 = scmp.ne.s32.totalorder %s146, %s162
    %p164 = scmp.eq.s32.totalorder %s18, 0
    %p165 = por %p163, %p164
    %p166 = scmp.le.s32.totalorder 1, %s12
    %p167 = scmp.lt.s32.totalorder %s12, 4
    %p168 = pnand %p166, %p167
    %p169 = pneg %p168
    // Predicated region
    $region9: #{ffc_bn_act_forward.4} parent=5 // pred_check
      _
    $region10: #{ffc_bn_act_forward.4} parent=5 // pred_check_branch
      %171 = sbr.rel (%p168) target = $region12
    $region11: #{ffc_bn_act_forward.4} parent=5 // pred_region
      %s172 = ssub.s32 %s12, 1
      // Predicated region
      $region13: #{ffc_bn_act_forward.4} parent=11 // pred_check
        %p173 = pneg %p85
      $region14: #{ffc_bn_act_forward.4} parent=11 // pred_check_branch
        %175 = sbr.rel (%p173) target = $region16
      $region15: #{ffc_bn_act_forward.4} parent=11 // pred_region
        _
      $region16: #{ffc_bn_act_forward.4} parent=11 // pred_fallthru
        _
      // Predicated region
      $region17: #{ffc_bn_act_forward.4} parent=11 // pred_check
        %p176 = pneg %p106
      $region18: #{ffc_bn_act_forward.4} parent=11 // pred_check_branch
        %178 = sbr.rel (%p176) target = $region20
      $region19: #{ffc_bn_act_forward.4} parent=11 // pred_region
        _
      $region20: #{ffc_bn_act_forward.4} parent=11 // pred_fallthru
        _
    $region12: #{ffc_bn_act_forward.4} parent=5 // pred_fallthru
      _
    %p179 = scmp.lt.s32.totalorder %s12, 3
    // Predicated region
    $region21: #{ffc_bn_act_forward.4} parent=5 // pred_check
      %p180 = pneg %p179
    $region22: #{ffc_bn_act_forward.4} parent=5 // pred_check_branch
      %182 = sbr.rel (%p180) target = $region24
    $region23: #{ffc_bn_act_forward.4} parent=5 // pred_region
      // Predicated region
      $region25: #{ffc_bn_act_forward.4} parent=23 // pred_check
        %p183 = pneg %p32
      $region26: #{ffc_bn_act_forward.4} parent=23 // pred_check_branch
        %185 = sbr.rel (%p183) target = $region28
      $region27: #{ffc_bn_act_forward.4} parent=23 // pred_region
        %p186 = scmp.lt.s32.totalorder %s12, 2
        %s187 = scalar_select %p186, %s12, 2
        %s188 = smul.addr %s187, 2
        %s189 = scalar_lea.vmem %s0, %s188
      $region28: #{ffc_bn_act_forward.4} parent=23 // pred_fallthru
        _
      // Predicated region
      $region29: #{ffc_bn_act_forward.4} parent=23 // pred_check
        %p190 = pneg %p58
      $region30: #{ffc_bn_act_forward.4} parent=23 // pred_check_branch
        %192 = sbr.rel (%p190) target = $region32
      $region31: #{ffc_bn_act_forward.4} parent=23 // pred_region
        %p193 = scmp.lt.s32.totalorder %s12, 2
        %s194 = scalar_select %p193, %s12, 2
        %s195 = smul.addr %s194, 2
        %s196 = scalar_lea.vmem %s1, %s195
      $region32: #{ffc_bn_act_forward.4} parent=23 // pred_fallthru
        _
    $region24: #{ffc_bn_act_forward.4} parent=5 // pred_fallthru
      _
    %p197 = scmp.le.s32.totalorder 1, %s12
    %p198 = scmp.lt.s32.totalorder %s12, 4
    %p199 = pnand %p197, %p198
    %p200 = pneg %p199
    // Predicated region
    $region33: #{ffc_bn_act_forward.4} parent=5 // pred_check
      _
    $region34: #{ffc_bn_act_forward.4} parent=5 // pred_check_branch
      %202 = sbr.rel (%p199) target = $region36
    $region35: #{ffc_bn_act_forward.4} parent=5 // pred_region
      %s203 = ssub.s32 %s12, 1
      %p204 = scmp.lt.s32.totalorder %s17, 2
      %s205 = scalar_select %p204, %s17, 2
      %s206 = smul.addr %s205, 2
      %s207 = scalar_lea.vmem %s0, %s206
      %p208 = pneg %p38
      %p209 = pneg %p35
      %p210 = scmp.lt.s32.totalorder %s17, 2
      %s211 = scalar_select %p210, %s17, 2
      %s212 = smul.addr %s211, 2
      %s213 = scalar_lea.vmem %s1, %s212
      %p214 = pneg %p64
      %p215 = pneg %p61
      %p216 = pneg %p85
      %p217 = pneg %p82
      %p218 = pneg %p106
      %p219 = pneg %p103
      %p220 = pneg %p132
      %p221 = pneg %p129
      %p222 = scmp.lt.s32.totalorder %s17, 2
      %s223 = scalar_select %p222, %s17, 2
      %s224 = smul.addr %s223, 2
      %s225 = scalar_lea.vmem %s4, %s224
      %p226 = pneg %p158
      %p227 = pneg %p155
      %p228 = scmp.lt.s32.totalorder %s17, 2
      %s229 = scalar_select %p228, %s17, 2
      %s230 = smul.addr %s229, 2
      %s231 = scalar_lea.vmem %s5, %s230
      %p232 = scmp.lt.s32.totalorder %s17, 2
      %s233 = scalar_select %p232, %s17, 2
      %s234 = smul.addr %s233, 2
      %s235 = scalar_lea.vmem %s0, %s234
      %p236 = scmp.lt.s32.totalorder %s17, 2
      %s237 = scalar_select %p236, %s17, 2
      %s238 = smul.addr %s237, 2
      %s239 = scalar_lea.vmem %s1, %s238
      %p240 = scmp.lt.s32.totalorder %s17, 2
      %s241 = scalar_select %p240, %s17, 2
      %s242 = smul.addr %s241, 2
      %s243 = scalar_lea.vmem %s4, %s242
      %p244 = scmp.lt.s32.totalorder %s17, 2
      %s245 = scalar_select %p244, %s17, 2
      %s246 = smul.addr %s245, 2
      %s247 = scalar_lea.vmem %s5, %s246
      %v248 = vld [vmem:[%s235] sm:$0x3]
      %v249 = vld [vmem:[%s239] sm:$0x3]
      %v251 = vrot.slane %v249, 6
      %vm253 = vcmask 1041408
      %v254 = vsel %vm253, %v248, %v251
      %v255 = vld [vmem:[%s2] sm:$0xf]
      %v256 = vld [vmem:[%s3] sm:$0xf]
      %258 = vset.pattern.permute.xlu0 0
      %259 = vperm.xlu0 %258, %v256
      %v260 = vpop.permute.xlu0 %259
      %vm262 = vcmask 31744
      %v264 = vsel %vm262, %v255, 0
      %vm266 = vcmask 1043456
      %v268 = vsel %vm266, %v254, 0
      %270 = vmatprep.subr.mxu0 0.0
      %271 = vmatpush1.msra.mxu0 %v268
      %272 = vmatprep.subr.mxu0 0.0
      %273 = vmatpush1.msra.mxu0 0.0
      %274 = vmatprep.subr.mxu0 0.0
      %275 = vmatpush1.msra.mxu0 0.0
      %276 = vmatprep.subr.mxu0 0.0
      %277 = vmatpush1.msra.mxu0 0.0
      %278 = vmatprep.subr.mxu0 0.0
      %279 = vmatpush1.msra.mxu0 0.0
      %280 = vmatprep.subr.mxu0 0.0
      %281 = vmatpush1.msra.mxu0 0.0
      %282 = vmatprep.subr.mxu0 0.0
      %283 = vmatpush1.msra.mxu0 0.0
      %284 = vmatprep.subr.mxu0 0.0
      %285 = vmatpush1.msra.mxu0 0.0
      %286 = vmatprep.subr.mxu0 0.0
      %287 = vmatpush1.msra.mxu0 0.0
      %288 = vmatprep.subr.mxu0 0.0
      %289 = vmatpush1.msra.mxu0 0.0
      %290 = vmatprep.subr.mxu0 0.0
      %291 = vmatpush1.msra.mxu0 0.0
      %292 = vmatprep.subr.mxu0 0.0
      %293 = vmatpush1.msra.mxu0 0.0
      %294 = vmatprep.subr.mxu0 0.0
      %295 = vmatpush1.msra.mxu0 0.0
      %296 = vmatprep.subr.mxu0 0.0
      %297 = vmatpush1.msra.mxu0 0.0
      %298 = vmatprep.subr.mxu0 0.0
      %299 = vmatpush1.msra.mxu0 0.0
      %300 = vmatprep.subr.mxu0 0.0
      %301 = vmatpush1.msra.mxu0 0.0
      %302 = vmatprep.subr.mxu0 0.0
      %303 = vmatpush1.msra.mxu0 0.0
      %304 = vmatprep.subr.mxu0 0.0
      %305 = vmatpush1.msra.mxu0 0.0
      %306 = vmatprep.subr.mxu0 0.0
      %307 = vmatpush1.msra.mxu0 0.0
      %308 = vmatprep.subr.mxu0 0.0
      %309 = vmatpush1.msra.mxu0 0.0
      %310 = vmatprep.subr.mxu0 0.0
      %311 = vmatpush1.msra.mxu0 0.0
      %312 = vmatprep.subr.mxu0 0.0
      %313 = vmatpush1.msra.mxu0 0.0
      %314 = vmatprep.subr.mxu0 0.0
      %315 = vmatpush1.msra.mxu0 0.0
      %316 = vmatprep.subr.mxu0 0.0
      %317 = vmatpush1.msra.mxu0 0.0
      %318 = vmatprep.subr.mxu0 0.0
      %319 = vmatpush1.msra.mxu0 0.0
      %320 = vmatprep.subr.mxu0 0.0
      %321 = vmatpush1.msra.mxu0 0.0
      %322 = vmatprep.subr.mxu0 0.0
      %323 = vmatpush1.msra.mxu0 0.0
      %324 = vmatprep.subr.mxu0 0.0
      %325 = vmatpush1.msra.mxu0 0.0
      %326 = vmatprep.subr.mxu0 0.0
      %327 = vmatpush1.msra.mxu0 0.0
      %328 = vmatprep.subr.mxu0 0.0
      %329 = vmatpush1.msra.mxu0 0.0
      %330 = vmatprep.subr.mxu0 0.0
      %331 = vmatpush1.msra.mxu0 0.0
      %332 = vmatprep.subr.mxu0 0.0
      %333 = vmatpush1.msra.mxu0 0.0
      %334 = vmatprep.mubr.f32.mxu0 0.0
      %335 = vmatmul.mubr.f32.gmra.mrb[0].mxu0 %v264
      %v336 = vpop.f32.mrb[0].mxu0
      %v337 = vadd.f32 %v260, %v336
      %v338 = vpop.f32.mrb[0].mxu0
      %339 = vdwg.mxu0
      %v340 = vmax.f32 %v337, 0.0
      %341 = vst [vmem:[%s243] sm:$0x3] %v340
      %342 = vst [vmem:[%s247 - $0x2] sm:$0xc] %v340
      %p343 = scmp.lt.s32.totalorder %s17, 2
      %s344 = scalar_select %p343, %s17, 2
      %s345 = smul.addr %s344, 2
      %s346 = scalar_lea.vmem %s4, %s345
      %p347 = scmp.lt.s32.totalorder %s17, 2
      %s348 = scalar_select %p347, %s17, 2
      %s349 = smul.addr %s348, 2
      %s350 = scalar_lea.vmem %s5, %s349
      // Predicated region
      $region37: #{ffc_bn_act_forward.4} parent=35 // pred_check
        %p351 = pneg %p129
      $region38: #{ffc_bn_act_forward.4} parent=35 // pred_check_branch
        %353 = sbr.rel (%p351) target = $region40
      $region39: #{ffc_bn_act_forward.4} parent=35 // pred_region
        _
      $region40: #{ffc_bn_act_forward.4} parent=35 // pred_fallthru
        _
      // Predicated region
      $region41: #{ffc_bn_act_forward.4} parent=35 // pred_check
        %p354 = pneg %p155
      $region42: #{ffc_bn_act_forward.4} parent=35 // pred_check_branch
        %356 = sbr.rel (%p354) target = $region44
      $region43: #{ffc_bn_act_forward.4} parent=35 // pred_region
        _
      $region44: #{ffc_bn_act_forward.4} parent=35 // pred_fallthru
        _
    $region36: #{ffc_bn_act_forward.4} parent=5 // pred_fallthru
      _
    %p357 = scmp.le.s32.totalorder 2, %s12
    // Predicated region
    $region45: #{ffc_bn_act_forward.4} parent=5 // pred_check
      %p358 = pneg %p357
    $region46: #{ffc_bn_act_forward.4} parent=5 // pred_check_branch
      %360 = sbr.rel (%p358) target = $region48
    $region47: #{ffc_bn_act_forward.4} parent=5 // pred_region
      %s361 = ssub.s32 %s12, 2
      // Predicated region
      $region49: #{ffc_bn_act_forward.4} parent=47 // pred_check
        %p362 = pneg %p135
      $region50: #{ffc_bn_act_forward.4} parent=47 // pred_check_branch
        %364 = sbr.rel (%p362) target = $region52
      $region51: #{ffc_bn_act_forward.4} parent=47 // pred_region
        %p365 = scmp.lt.s32.totalorder %s18, 2
        %s366 = scalar_select %p365, %s18, 2
        %s367 = smul.addr %s366, 2
        %s368 = scalar_lea.vmem %s4, %s367
      $region52: #{ffc_bn_act_forward.4} parent=47 // pred_fallthru
        _
      // Predicated region
      $region53: #{ffc_bn_act_forward.4} parent=47 // pred_check
        %p369 = pneg %p161
      $region54: #{ffc_bn_act_forward.4} parent=47 // pred_check_branch
        %371 = sbr.rel (%p369) target = $region56
      $region55: #{ffc_bn_act_forward.4} parent=47 // pred_region
        %p372 = scmp.lt.s32.totalorder %s18, 2
        %s373 = scalar_select %p372, %s18, 2
        %s374 = smul.addr %s373, 2
        %s375 = scalar_lea.vmem %s5, %s374
      $region56: #{ffc_bn_act_forward.4} parent=47 // pred_fallthru
        _
    $region48: #{ffc_bn_act_forward.4} parent=5 // pred_fallthru
      _
  $region6: #{ffc_bn_act_forward.4} parent=0 // loop_footer
    %s16 = sadd.s32 1, %s12
  $region7: #{ffc_bn_act_forward.4} parent=0 // loop_footer_branch
    %11 = sbr.rel target = $region3
  $region8: #{ffc_bn_act_forward.4} parent=0 // loop_exit
    _

// kernel: ffc_bn_act_forward.5
$region0: #{ffc_bn_act_forward.5}
  #allocation0 [shape = 'u32[]', space=smem, size = 0x4, offset = 0x4, fixed_abs, tag = 'smem constant byte address 0x4 - core index']
  #allocation1 [shape = 'u32[144,128]{1,0:T(1,128)}', space=vmem, size = 0x12000, scoped, tag = 'internal scratch']
  %s0 = inlined_call_operand.vmem [shape: f32[2,512], index: 0, kind: input, shape index: {}]
  %s1 = inlined_call_operand.vmem [shape: f32[2,512], index: 1, kind: input, shape index: {}]
  %s2 = inlined_call_operand.vmem [shape: f32[4,512], index: 2, kind: input, shape index: {}]
  %s3 = inlined_call_operand.vmem [shape: f32[4,6], index: 3, kind: input, shape index: {}]
  %s4 = inlined_call_operand.vmem [shape: f32[4,1], index: 4, kind: input, shape index: {}]
  %s5 = inlined_call_operand.vmem [shape: f32[4,512], index: 5, kind: output, shape index: {}]
  %s6 = sld [smem:[#allocation0]]
  $region53: #{ffc_bn_act_forward.5} parent=0
    _
  %s8 = ssub.s32 1, %s6
  %s9 = scalar_select 0, %s8, %s6
  loop: start=0, step=1, limit=4
  $region2: #{ffc_bn_act_forward.5} parent=0 // loop_pre_header
    _
  $region3: #{ffc_bn_act_forward.5} parent=0 // loop_header
    %s11 = sphi 0, %s15
    %p12 = scmp.ge.s32.totalorder %s11, 4
    %s21 = sphi 0, %s23
    %s24 = sphi 0, %s21
    %s25 = sphi 0, %s24
    %s41 = sphi 0, %s25
    %s47 = sphi 0, %s49
    %s50 = sphi 0, %s47
    %s51 = sphi 0, %s50
    %s67 = sphi 0, %s51
    %s73 = sphi 0, %s75
    %s76 = sphi 0, %s73
    %s77 = sphi 0, %s76
    %s93 = sphi 0, %s77
    %s97 = sphi 0, %s97
    %s99 = sphi 0, %s97
    %s100 = sphi 0, %s99
    %s114 = sphi 0, %s100
    %s118 = sphi 0, %s118
    %s120 = sphi 0, %s118
    %s121 = sphi 0, %s120
    %s135 = sphi 0, %s121
    %s141 = sphi 0, %s143
    %s144 = sphi 0, %s141
    %s145 = sphi 0, %s144
    %s161 = sphi 0, %s145
  $region4: #{ffc_bn_act_forward.5} parent=0 // loop_header_branch
    %14 = sbr.rel (%p12) target = $region8
  $region5: #{ffc_bn_act_forward.5} parent=0 // loop_body
    %s16 = ssub.s32 %s11, 1
    %s17 = ssub.s32 %s11, 2
    %s18 = sadd.s32 %s11, 1
    %s19 = ssub.s32 %s11, %s18
    %p20 = scmp.eq.s32.totalorder %s19, 0
    %s22 = sadd.s32 %s21, 1
    %s23 = scalar_select %p20, %s21, %s22
    %p26 = pneg %p20
    %p27 = scmp.eq.s32.totalorder %s11, 1
    %p28 = por %p26, %p27
    %p29 = scmp.ne.s32.totalorder %s21, %s24
    %p30 = scmp.eq.s32.totalorder %s11, 0
    %p31 = por %p29, %p30
    %p32 = scmp.ne.s32.totalorder %s21, %s24
    %p33 = scmp.eq.s32.totalorder %s16, 1
    %p34 = por %p32, %p33
    %p35 = scmp.ne.s32.totalorder %s24, %s25
    %p36 = scmp.eq.s32.totalorder %s16, 0
    %p37 = por %p35, %p36
    %p38 = scmp.ne.s32.totalorder %s24, %s25
    %p39 = scmp.eq.s32.totalorder %s17, 1
    %p40 = por %p38, %p39
    %p42 = scmp.ne.s32.totalorder %s25, %s41
    %p43 = scmp.eq.s32.totalorder %s17, 0
    %p44 = por %p42, %p43
    %s45 = ssub.s32 %s11, %s18
    %p46 = scmp.eq.s32.totalorder %s45, 0
    %s48 = sadd.s32 %s47, 1
    %s49 = scalar_select %p46, %s47, %s48
    %p52 = pneg %p46
    %p53 = scmp.eq.s32.totalorder %s11, 1
    %p54 = por %p52, %p53
    %p55 = scmp.ne.s32.totalorder %s47, %s50
    %p56 = scmp.eq.s32.totalorder %s11, 0
    %p57 = por %p55, %p56
    %p58 = scmp.ne.s32.totalorder %s47, %s50
    %p59 = scmp.eq.s32.totalorder %s16, 1
    %p60 = por %p58, %p59
    %p61 = scmp.ne.s32.totalorder %s50, %s51
    %p62 = scmp.eq.s32.totalorder %s16, 0
    %p63 = por %p61, %p62
    %p64 = scmp.ne.s32.totalorder %s50, %s51
    %p65 = scmp.eq.s32.totalorder %s17, 1
    %p66 = por %p64, %p65
    %p68 = scmp.ne.s32.totalorder %s51, %s67
    %p69 = scmp.eq.s32.totalorder %s17, 0
    %p70 = por %p68, %p69
    %s71 = ssub.s32 %s11, %s18
    %p72 = scmp.eq.s32.totalorder %s71, 0
    %s74 = sadd.s32 %s73, 1
    %s75 = scalar_select %p72, %s73, %s74
    %p78 = pneg %p72
    %p79 = scmp.eq.s32.totalorder %s11, 1
    %p80 = por %p78, %p79
    %p81 = scmp.ne.s32.totalorder %s73, %s76
    %p82 = scmp.eq.s32.totalorder %s11, 0
    %p83 = por %p81, %p82
    %p84 = scmp.ne.s32.totalorder %s73, %s76
    %p85 = scmp.eq.s32.totalorder %s16, 1
    %p86 = por %p84, %p85
    %p87 = scmp.ne.s32.totalorder %s76, %s77
    %p88 = scmp.eq.s32.totalorder %s16, 0
    %p89 = por %p87, %p88
    %p90 = scmp.ne.s32.totalorder %s76, %s77
    %p91 = scmp.eq.s32.totalorder %s17, 1
    %p92 = por %p90, %p91
    %p94 = scmp.ne.s32.totalorder %s77, %s93
    %p95 = scmp.eq.s32.totalorder %s17, 0
    %p96 = por %p94, %p95
    %s98 = sadd.s32 %s97, 1
    %p101 = scmp.eq.s32.totalorder %s11, 1
    %p102 = scmp.ne.s32.totalorder %s97, %s99
    %p103 = scmp.eq.s32.totalorder %s11, 0
    %p104 = por %p102, %p103
    %p105 = scmp.ne.s32.totalorder %s97, %s99
    %p106 = scmp.eq.s32.totalorder %s16, 1
    %p107 = por %p105, %p106
    %p108 = scmp.ne.s32.totalorder %s99, %s100
    %p109 = scmp.eq.s32.totalorder %s16, 0
    %p110 = por %p108, %p109
    %p111 = scmp.ne.s32.totalorder %s99, %s100
    %p112 = scmp.eq.s32.totalorder %s17, 1
    %p113 = por %p111, %p112
    %p115 = scmp.ne.s32.totalorder %s100, %s114
    %p116 = scmp.eq.s32.totalorder %s17, 0
    %p117 = por %p115, %p116
    %s119 = sadd.s32 %s118, 1
    %p122 = scmp.eq.s32.totalorder %s11, 1
    %p123 = scmp.ne.s32.totalorder %s118, %s120
    %p124 = scmp.eq.s32.totalorder %s11, 0
    %p125 = por %p123, %p124
    %p126 = scmp.ne.s32.totalorder %s118, %s120
    %p127 = scmp.eq.s32.totalorder %s16, 1
    %p128 = por %p126, %p127
    %p129 = scmp.ne.s32.totalorder %s120, %s121
    %p130 = scmp.eq.s32.totalorder %s16, 0
    %p131 = por %p129, %p130
    %p132 = scmp.ne.s32.totalorder %s120, %s121
    %p133 = scmp.eq.s32.totalorder %s17, 1
    %p134 = por %p132, %p133
    %p136 = scmp.ne.s32.totalorder %s121, %s135
    %p137 = scmp.eq.s32.totalorder %s17, 0
    %p138 = por %p136, %p137
    %s139 = ssub.s32 %s11, %s18
    %p140 = scmp.eq.s32.totalorder %s139, 0
    %s142 = sadd.s32 %s141, 1
    %s143 = scalar_select %p140, %s141, %s142
    %p146 = pneg %p140
    %p147 = scmp.eq.s32.totalorder %s11, 1
    %p148 = por %p146, %p147
    %p149 = scmp.ne.s32.totalorder %s141, %s144
    %p150 = scmp.eq.s32.totalorder %s11, 0
    %p151 = por %p149, %p150
    %p152 = scmp.ne.s32.totalorder %s141, %s144
    %p153 = scmp.eq.s32.totalorder %s16, 1
    %p154 = por %p152, %p153
    %p155 = scmp.ne.s32.totalorder %s144, %s145
    %p156 = scmp.eq.s32.totalorder %s16, 0
    %p157 = por %p155, %p156
    %p158 = scmp.ne.s32.totalorder %s144, %s145
    %p159 = scmp.eq.s32.totalorder %s17, 1
    %p160 = por %p158, %p159
    %p162 = scmp.ne.s32.totalorder %s145, %s161
    %p163 = scmp.eq.s32.totalorder %s17, 0
    %p164 = por %p162, %p163
    %p165 = scmp.le.s32.totalorder 1, %s11
    %p166 = scmp.lt.s32.totalorder %s11, 3
    %p167 = pnand %p165, %p166
    %p168 = pneg %p167
    // Predicated region
    $region9: #{ffc_bn_act_forward.5} parent=5 // pred_check
      _
    $region10: #{ffc_bn_act_forward.5} parent=5 // pred_check_branch
      %170 = sbr.rel (%p167) target = $region12
    $region11: #{ffc_bn_act_forward.5} parent=5 // pred_region
      %s171 = ssub.s32 %s11, 1
      // Predicated region
      $region13: #{ffc_bn_act_forward.5} parent=11 // pred_check
        %p172 = pneg %p110
      $region14: #{ffc_bn_act_forward.5} parent=11 // pred_check_branch
        %174 = sbr.rel (%p172) target = $region16
      $region15: #{ffc_bn_act_forward.5} parent=11 // pred_region
        _
      $region16: #{ffc_bn_act_forward.5} parent=11 // pred_fallthru
        _
      // Predicated region
      $region17: #{ffc_bn_act_forward.5} parent=11 // pred_check
        %p175 = pneg %p131
      $region18: #{ffc_bn_act_forward.5} parent=11 // pred_check_branch
        %177 = sbr.rel (%p175) target = $region20
      $region19: #{ffc_bn_act_forward.5} parent=11 // pred_region
        _
      $region20: #{ffc_bn_act_forward.5} parent=11 // pred_fallthru
        _
    $region12: #{ffc_bn_act_forward.5} parent=5 // pred_fallthru
      _
    %p178 = scmp.lt.s32.totalorder %s11, 2
    // Predicated region
    $region21: #{ffc_bn_act_forward.5} parent=5 // pred_check
      %p179 = pneg %p178
    $region22: #{ffc_bn_act_forward.5} parent=5 // pred_check_branch
      %181 = sbr.rel (%p179) target = $region24
    $region23: #{ffc_bn_act_forward.5} parent=5 // pred_region
      // Predicated region
      $region25: #{ffc_bn_act_forward.5} parent=23 // pred_check
        %p182 = pneg %p31
      $region26: #{ffc_bn_act_forward.5} parent=23 // pred_check_branch
        %184 = sbr.rel (%p182) target = $region28
      $region27: #{ffc_bn_act_forward.5} parent=23 // pred_region
        %s185 = smul.u32 2, %s11
        %p186 = scmp.lt.s32.totalorder %s185, 3
        %s187 = scalar_select %p186, %s185, 3
        %s188 = smul.addr %s187, 2
        %s189 = scalar_lea.vmem %s0, %s188
        %s190 = smul.u32 2, %s11
      $region28: #{ffc_bn_act_forward.5} parent=23 // pred_fallthru
        _
      // Predicated region
      $region29: #{ffc_bn_act_forward.5} parent=23 // pred_check
        %p191 = pneg %p57
      $region30: #{ffc_bn_act_forward.5} parent=23 // pred_check_branch
        %193 = sbr.rel (%p191) target = $region32
      $region31: #{ffc_bn_act_forward.5} parent=23 // pred_region
        %s194 = smul.u32 2, %s11
        %p195 = scmp.lt.s32.totalorder %s194, 3
        %s196 = scalar_select %p195, %s194, 3
        %s197 = smul.addr %s196, 2
        %s198 = scalar_lea.vmem %s1, %s197
        %s199 = smul.u32 2, %s11
      $region32: #{ffc_bn_act_forward.5} parent=23 // pred_fallthru
        _
      // Predicated region
      $region33: #{ffc_bn_act_forward.5} parent=23 // pred_check
        %p200 = pneg %p83
      $region34: #{ffc_bn_act_forward.5} parent=23 // pred_check_branch
        %202 = sbr.rel (%p200) target = $region36
      $region35: #{ffc_bn_act_forward.5} parent=23 // pred_region
        %s203 = smul.u32 2, %s11
        %p204 = scmp.lt.s32.totalorder %s203, 3
        %s205 = scalar_select %p204, %s203, 3
        %s206 = smul.addr %s205, 4
        %s207 = scalar_lea.vmem %s2, %s206
        %s208 = smul.u32 2, %s11
      $region36: #{ffc_bn_act_forward.5} parent=23 // pred_fallthru
        _
    $region24: #{ffc_bn_act_forward.5} parent=5 // pred_fallthru
      _
    %p209 = scmp.le.s32.totalorder 1, %s11
    %p210 = scmp.lt.s32.totalorder %s11, 3
    %p211 = pnand %p209, %p210
    %p212 = pneg %p211
    // Predicated region
    $region37: #{ffc_bn_act_forward.5} parent=5 // pred_check
      _
    $region38: #{ffc_bn_act_forward.5} parent=5 // pred_check_branch
      %214 = sbr.rel (%p211) target = $region40
    $region39: #{ffc_bn_act_forward.5} parent=5 // pred_region
      %s215 = ssub.s32 %s11, 1
      %s216 = smul.u32 2, %s16
      %p217 = scmp.lt.s32.totalorder %s216, 3
      %s218 = scalar_select %p217, %s216, 3
      %s219 = smul.addr %s218, 2
      %s220 = scalar_lea.vmem %s0, %s219
      %p221 = pneg %p37
      %p222 = pneg %p34
      %s223 = smul.u32 2, %s16
      %p224 = scmp.lt.s32.totalorder %s223, 3
      %s225 = scalar_select %p224, %s223, 3
      %s226 = smul.addr %s225, 2
      %s227 = scalar_lea.vmem %s1, %s226
      %p228 = pneg %p63
      %p229 = pneg %p60
      %s230 = smul.u32 2, %s16
      %p231 = scmp.lt.s32.totalorder %s230, 3
      %s232 = scalar_select %p231, %s230, 3
      %s233 = smul.addr %s232, 4
      %s234 = scalar_lea.vmem %s2, %s233
      %p235 = pneg %p89
      %p236 = pneg %p86
      %p237 = pneg %p110
      %p238 = pneg %p107
      %p239 = pneg %p131
      %p240 = pneg %p128
      %p241 = pneg %p157
      %p242 = pneg %p154
      %s243 = smul.u32 2, %s16
      %p244 = scmp.lt.s32.totalorder %s243, 3
      %s245 = scalar_select %p244, %s243, 3
      %s246 = smul.addr %s245, 4
      %s247 = scalar_lea.vmem %s5, %s246
      %s248 = smul.u32 2, %s16
      %p249 = scmp.lt.s32.totalorder %s248, 3
      %s250 = scalar_select %p249, %s248, 3
      %s251 = smul.addr %s250, 2
      %s252 = scalar_lea.vmem %s0, %s251
      %s253 = smul.u32 2, %s16
      %s254 = smul.u32 2, %s16
      %p255 = scmp.lt.s32.totalorder %s254, 3
      %s256 = scalar_select %p255, %s254, 3
      %s257 = smul.addr %s256, 2
      %s258 = scalar_lea.vmem %s1, %s257
      %s259 = smul.u32 2, %s16
      %s260 = smul.u32 2, %s16
      %p261 = scmp.lt.s32.totalorder %s260, 3
      %s262 = scalar_select %p261, %s260, 3
      %s263 = smul.addr %s262, 4
      %s264 = scalar_lea.vmem %s2, %s263
      %s265 = smul.u32 2, %s16
      %s266 = smul.u32 2, %s16
      %p267 = scmp.lt.s32.totalorder %s266, 3
      %s268 = scalar_select %p267, %s266, 3
      %s269 = smul.addr %s268, 4
      %s270 = scalar_lea.vmem %s5, %s269
      %s271 = smul.u32 2, %s16
      %v272 = vld [vmem:[%s252] sm:$0xf]
      %v273 = vld [vmem:[%s258] sm:$0xf]
      %v274 = vadd.f32 %v272, %v273
      %v275 = vld [vmem:[%s264] sm:$0xff]
      %v278 = vunpack.c.l.s4 1983009808
      %v279 = vunpack.c.0.s8 %v278
      %v280 = vlaneseq
      %v281 = vshrl.u32 %v280, 7
      %v282 = vsub.s32 %v279, %v281
      %v283 = vrot.slane %v274, %v282
      %v284 = vcombine.high %v283, %v283
      %v288 = vcombine.high %v275, %v275
      %v289 = vrot.slane %v275, 6
      %v290 = vrot.slane %v288, 6
      %vm293 = vcmask 1041408
      %v294 = vsel %vm293, %v283, %v289
      %v295 = vsel %vm293, %v284, %v290
      %v296 = vld [vmem:[%s3] sm:$0xf]
      %v297 = vld [vmem:[%s4] sm:$0xf]
      %299 = vset.pattern.permute.xlu0 0
      %300 = vperm.xlu0 %299, %v297
      %v301 = vpop.permute.xlu0 %300
      %vm303 = vcmask 48128
      %v305 = vsel %vm303, %v296, 0
      %vm307 = vcmask 1045504
      %v309 = vsel %vm307, %v294, 0
      %v312 = vsel %vm307, %v295, 0
      %314 = vmatprep.subr.mxu0 %v312
      %315 = vmatpush1.msra.mxu0 %v309
      %316 = vmatprep.subr.mxu0 0.0
      %317 = vmatpush1.msra.mxu0 0.0
      %318 = vmatprep.subr.mxu0 0.0
      %319 = vmatpush1.msra.mxu0 0.0
      %320 = vmatprep.subr.mxu0 0.0
      %321 = vmatpush1.msra.mxu0 0.0
      %322 = vmatprep.subr.mxu0 0.0
      %323 = vmatpush1.msra.mxu0 0.0
      %324 = vmatprep.subr.mxu0 0.0
      %325 = vmatpush1.msra.mxu0 0.0
      %326 = vmatprep.subr.mxu0 0.0
      %327 = vmatpush1.msra.mxu0 0.0
      %328 = vmatprep.subr.mxu0 0.0
      %329 = vmatpush1.msra.mxu0 0.0
      %330 = vmatprep.subr.mxu0 0.0
      %331 = vmatpush1.msra.mxu0 0.0
      %332 = vmatprep.subr.mxu0 0.0
      %333 = vmatpush1.msra.mxu0 0.0
      %334 = vmatprep.subr.mxu0 0.0
      %335 = vmatpush1.msra.mxu0 0.0
      %336 = vmatprep.subr.mxu0 0.0
      %337 = vmatpush1.msra.mxu0 0.0
      %338 = vmatprep.subr.mxu0 0.0
      %339 = vmatpush1.msra.mxu0 0.0
      %340 = vmatprep.subr.mxu0 0.0
      %341 = vmatpush1.msra.mxu0 0.0
      %342 = vmatprep.subr.mxu0 0.0
      %343 = vmatpush1.msra.mxu0 0.0
      %344 = vmatprep.subr.mxu0 0.0
      %345 = vmatpush1.msra.mxu0 0.0
      %346 = vmatprep.subr.mxu0 0.0
      %347 = vmatpush1.msra.mxu0 0.0
      %348 = vmatprep.subr.mxu0 0.0
      %349 = vmatpush1.msra.mxu0 0.0
      %350 = vmatprep.subr.mxu0 0.0
      %351 = vmatpush1.msra.mxu0 0.0
      %352 = vmatprep.subr.mxu0 0.0
      %353 = vmatpush1.msra.mxu0 0.0
      %354 = vmatprep.subr.mxu0 0.0
      %355 = vmatpush1.msra.mxu0 0.0
      %356 = vmatprep.subr.mxu0 0.0
      %357 = vmatpush1.msra.mxu0 0.0
      %358 = vmatprep.subr.mxu0 0.0
      %359 = vmatpush1.msra.mxu0 0.0
      %360 = vmatprep.subr.mxu0 0.0
      %361 = vmatpush1.msra.mxu0 0.0
      %362 = vmatprep.subr.mxu0 0.0
      %363 = vmatpush1.msra.mxu0 0.0
      %364 = vmatprep.subr.mxu0 0.0
      %365 = vmatpush1.msra.mxu0 0.0
      %366 = vmatprep.subr.mxu0 0.0
      %367 = vmatpush1.msra.mxu0 0.0
      %368 = vmatprep.subr.mxu0 0.0
      %369 = vmatpush1.msra.mxu0 0.0
      %370 = vmatprep.subr.mxu0 0.0
      %371 = vmatpush1.msra.mxu0 0.0
      %372 = vmatprep.subr.mxu0 0.0
      %373 = vmatpush1.msra.mxu0 0.0
      %374 = vmatprep.subr.mxu0 0.0
      %375 = vmatpush1.msra.mxu0 0.0
      %376 = vmatprep.subr.mxu0 0.0
      %377 = vmatpush1.msra.mxu0 0.0
      %378 = vmatprep.mubr.f32.mxu0 0.0
      %379 = vmatmul.mubr.f32.gmra.mrb[0].mxu0 %v305
      %v380 = vpop.f32.mrb[0].mxu0
      %v381 = vadd.f32 %v301, %v380
      %v382 = vpop.f32.mrb[0].mxu0
      %v383 = vadd.f32 %v301, %v382
      %384 = vdwg.mxu0
      %v387 = vcombine.low %v381, %v383
      %389 = vst [vmem:[%s270] sm:$0xff] %v387
      %s390 = smul.u32 2, %s16
      %p391 = scmp.lt.s32.totalorder %s390, 3
      %s392 = scalar_select %p391, %s390, 3
      %s393 = smul.addr %s392, 4
      %s394 = scalar_lea.vmem %s5, %s393
      // Predicated region
      $region41: #{ffc_bn_act_forward.5} parent=39 // pred_check
        %p395 = pneg %p154
      $region42: #{ffc_bn_act_forward.5} parent=39 // pred_check_branch
        %397 = sbr.rel (%p395) target = $region44
      $region43: #{ffc_bn_act_forward.5} parent=39 // pred_region
        %s398 = smul.u32 2, %s16
      $region44: #{ffc_bn_act_forward.5} parent=39 // pred_fallthru
        _
    $region40: #{ffc_bn_act_forward.5} parent=5 // pred_fallthru
      _
    %p399 = scmp.le.s32.totalorder 2, %s11
    // Predicated region
    $region45: #{ffc_bn_act_forward.5} parent=5 // pred_check
      %p400 = pneg %p399
    $region46: #{ffc_bn_act_forward.5} parent=5 // pred_check_branch
      %402 = sbr.rel (%p400) target = $region48
    $region47: #{ffc_bn_act_forward.5} parent=5 // pred_region
      %s403 = ssub.s32 %s11, 2
      // Predicated region
      $region49: #{ffc_bn_act_forward.5} parent=47 // pred_check
        %p404 = pneg %p160
      $region50: #{ffc_bn_act_forward.5} parent=47 // pred_check_branch
        %406 = sbr.rel (%p404) target = $region52
      $region51: #{ffc_bn_act_forward.5} parent=47 // pred_region
        %s407 = smul.u32 2, %s17
        %p408 = scmp.lt.s32.totalorder %s407, 3
        %s409 = scalar_select %p408, %s407, 3
        %s410 = smul.addr %s409, 4
        %s411 = scalar_lea.vmem %s5, %s410
      $region52: #{ffc_bn_act_forward.5} parent=47 // pred_fallthru
        _
    $region48: #{ffc_bn_act_forward.5} parent=5 // pred_fallthru
      _
  $region6: #{ffc_bn_act_forward.5} parent=0 // loop_footer
    %s15 = sadd.s32 1, %s11
  $region7: #{ffc_bn_act_forward.5} parent=0 // loop_footer_branch
    %10 = sbr.rel target = $region3
  $region8: #{ffc_bn_act_forward.5} parent=0 // loop_exit
    _

</llo_original>
